<compile_context>
chip_gen: v7x
topology: tpu7x:2x2x1
jax: 0.10.0
libtpu: 0.0.40
codegen_flags: <defaults>
</compile_context>

<pallas_src>
import math
import jax
import jax.numpy as jnp
from jax.experimental import pallas as pl
from jax.experimental.pallas import tpu as pltpu

# ---- small, deterministic config (consistent with SASRec args) ----
HIDDEN = 32          # args.hidden_units
NUM_HEADS = 2        # args.num_heads
NUM_BLOCKS = 2       # args.num_blocks
MAXLEN = 8           # args.maxlen
BATCH = 2
ITEM_NUM = 50
EPS = 1e-8           # LayerNorm eps used by SASRec

# row layout of the packed vector slab, per layer:
#   0 ln1_g, 1 ln1_b, 2 bq, 3 bk, 4 bv, 5 bo, 6 ln2_g, 7 ln2_b, 8 b1, 9 b2
VEC_PER_LAYER = 10
OUT_LANES = 128      # lane-dense output width (logits padded to one full 128-lane row)


def _detect_parallel_blocks():
    """2-wide parallel grid over batch halves on 2-TensorCore chips (v7x), else 1."""
    try:
        kind = jax.devices()[0].device_kind.lower()
    except Exception:
        return 1
    if "v7" in kind or "7x" in kind:
        return 2
    return 1


NUM_PARALLEL = _detect_parallel_blocks()
if BATCH % NUM_PARALLEL != 0:
    NUM_PARALLEL = 1


def sasrec_kernel(tm_ref, x_ref, pn_ref, w_ref, v_ref, out_ref):
    """One grid step = one batch block (the whole batch when grid=(1,)).

    tm_ref : (Bb*T, 1)      timeline mask: 1.0 for real tokens, 0.0 for padding
    x_ref  : (Bb*T, D)      item_emb*sqrt(D) + pos_emb, batch-flattened, f32
    pn_ref : (2, Bb*T, D)   stacked pos/neg item embeddings, f32
    w_ref  : (L, 6, D, D)   packed [wq, wk, wv, wo, w1, w2], bf16 (matmul-only operands)
    v_ref  : (L*10+2, D)    packed per-layer LN params / biases + [last_g, last_b], f32
    out_ref: (1, 2, 128)    lane-padded [pos_logits ; neg_logits]
    """
    x = x_ref[...]                       # (BTb, D) f32
    tmask = tm_ref[...]                  # (BTb, 1) f32
    BTb, D = x.shape
    T = MAXLEN
    Bb = BTb // T
    H = NUM_HEADS
    Dh = D // H
    scale = 1.0 / math.sqrt(Dh)
    bf16 = jnp.bfloat16
    f32 = jnp.float32

    # ---- (T, T) causal-only mask built in-register; attention is per-batch, so no
    #      cross-batch scores are computed (no div/mod block mask, no O(B^2 T^2) work) ----
    r = jax.lax.broadcasted_iota(jnp.int32, (T, T), 0)
    c = jax.lax.broadcasted_iota(jnp.int32, (T, T), 1)
    cmask = jnp.where(c <= r, 0.0, -1e30).astype(f32)

    # ---- all LN params / biases loaded once, statically row-sliced ----
    vecs = v_ref[...]                    # (L*10+2, D) f32

    def vrow(i):                         # (1, D) row -> broadcasts over BTb
        return vecs[i:i + 1, :]

    def layernorm(v, g, b):
        mu = jnp.mean(v, axis=-1, keepdims=True)
        var = jnp.mean((v - mu) ** 2, axis=-1, keepdims=True)
        return (v - mu) * jax.lax.rsqrt(var + EPS) * g + b

    # timeline-mask zeroing of padded positions after the embedding (SASRec log2feats).
    x = x * tmask

    for l in range(NUM_BLOCKS):
        base = l * VEC_PER_LAYER
        # aligned (D, D) weight tiles via leading-axis indexing -- no lane-slice relayouts
        wq, wk, wv = w_ref[l, 0], w_ref[l, 1], w_ref[l, 2]
        wo, w1, w2 = w_ref[l, 3], w_ref[l, 4], w_ref[l, 5]
        ln1_g, ln1_b = vrow(base + 0), vrow(base + 1)
        bq, bk, bv, bo = vrow(base + 2), vrow(base + 3), vrow(base + 4), vrow(base + 5)
        ln2_g, ln2_b = vrow(base + 6), vrow(base + 7)
        b1, b2 = vrow(base + 8), vrow(base + 9)

        # --- attention sub-block:  Q = LN(x);  x = Q + MHA(Q, x, x) ---
        Q = layernorm(x, ln1_g, ln1_b)                                       # (BTb, D) f32
        q = jnp.dot(Q.astype(bf16), wq, preferred_element_type=f32) + bq    # query from LN(x)
        k = jnp.dot(x.astype(bf16), wk, preferred_element_type=f32) + bk    # key from raw x
        v = jnp.dot(x.astype(bf16), wv, preferred_element_type=f32) + bv    # value from raw x

        q3 = q.reshape(Bb, T, D)
        k3 = k.reshape(Bb, T, D)
        v3 = v.reshape(Bb, T, D)
        heads = []
        for h in range(H):                                                   # H=2, static unroll
            cs = slice(h * Dh, (h + 1) * Dh)
            qh = q3[..., cs].astype(bf16)                                    # (Bb, T, Dh)
            kh = k3[..., cs].astype(bf16)
            vh = v3[..., cs].astype(bf16)
            s = jnp.einsum('bqd,bkd->bqk', qh, kh,
                           preferred_element_type=f32) * scale + cmask[None, :, :]
            m = jnp.max(s, axis=-1, keepdims=True)
            e = jnp.exp(s - m)
            p = e / jnp.sum(e, axis=-1, keepdims=True)                       # exact softmax, f32
            heads.append(jnp.einsum('bqk,bkd->bqd', p.astype(bf16), vh,
                                    preferred_element_type=f32))             # (Bb, T, Dh)
        o = jnp.concatenate(heads, axis=-1).reshape(BTb, D)                  # concat heads
        attn = jnp.dot(o.astype(bf16), wo, preferred_element_type=f32) + bo
        x = Q + attn

        # --- feed-forward sub-block:  x = LN(x);  x = x + conv2(relu(conv1(x))) ---
        x = layernorm(x, ln2_g, ln2_b)
        h1 = jnp.maximum(jnp.dot(x.astype(bf16), w1, preferred_element_type=f32) + b1, 0.0)
        x = x + jnp.dot(h1.astype(bf16), w2, preferred_element_type=f32) + b2

        # timeline-mask zeroing after every block (SASRec log2feats).
        x = x * tmask

    last_g = vrow(NUM_BLOCKS * VEC_PER_LAYER + 0)
    last_b = vrow(NUM_BLOCKS * VEC_PER_LAYER + 1)
    feats = layernorm(x, last_g, last_b)                                     # (BTb, D)

    # pos/neg logits together; pad to 128 lanes so the store is a full-lane (unmasked) vst.
    logits = jnp.sum(pn_ref[...] * feats[None, :, :], axis=-1)               # (2, BTb)
    pad = jnp.zeros((2, OUT_LANES - BTb), f32)
    out_ref[0] = jnp.concatenate([logits, pad], axis=-1)                     # (2, 128)


def init_params(key):
    keys = jax.random.split(key, 14)

    def rnd(k, shape, scale=0.05):
        return (scale * jax.random.normal(k, shape)).astype(jnp.float32)

    L, D = NUM_BLOCKS, HIDDEN
    item_emb = rnd(keys[0], (ITEM_NUM + 1, D)).at[0].set(0.0)   # padding_idx=0
    pos_emb = rnd(keys[1], (MAXLEN + 1, D)).at[0].set(0.0)      # padding_idx=0
    return dict(
        item_emb=item_emb,
        pos_emb=pos_emb,
        # attention layernorms
        ln1_g=jnp.ones((L, D), jnp.float32), ln1_b=jnp.zeros((L, D), jnp.float32),
        # MHA in_proj (pre-transposed: y = x @ W) and biases
        wq=rnd(keys[2], (L, D, D)), wk=rnd(keys[3], (L, D, D)), wv=rnd(keys[4], (L, D, D)),
        bq=rnd(keys[5], (L, D)), bk=rnd(keys[6], (L, D)), bv=rnd(keys[7], (L, D)),
        # MHA out_proj
        wo=rnd(keys[8], (L, D, D)), bo=rnd(keys[9], (L, D)),
        # forward layernorms
        ln2_g=jnp.ones((L, D), jnp.float32), ln2_b=jnp.zeros((L, D), jnp.float32),
        # PointWiseFeedForward conv1/conv2 (kernel_size=1 -> dense, pre-transposed)
        w1=rnd(keys[10], (L, D, D)), b1=rnd(keys[11], (L, D)),
        w2=rnd(keys[12], (L, D, D)), b2=rnd(keys[13], (L, D)),
        # last layernorm
        lastg=jnp.ones((D,), jnp.float32), lastb=jnp.zeros((D,), jnp.float32),
    )


def pack_params(params):
    """One-time host-side slab packing (hoisted out of the per-call path)."""
    L, D = NUM_BLOCKS, HIDDEN
    # (L, 6, D, D): each (D, D) weight is an aligned tile selected by leading-axis indexing.
    # Stored bf16: weights feed the MXU only (accumulation is f32 in-kernel); halves the DMA.
    wslab = jnp.stack([params['wq'], params['wk'], params['wv'],
                       params['wo'], params['w1'], params['w2']],
                      axis=1).astype(jnp.bfloat16)                           # (L, 6, D, D)
    vec = jnp.stack([params['ln1_g'], params['ln1_b'],
                     params['bq'], params['bk'], params['bv'], params['bo'],
                     params['ln2_g'], params['ln2_b'],
                     params['b1'], params['b2']], axis=1).reshape(L * VEC_PER_LAYER, D)
    vslab = jnp.concatenate([vec, params['lastg'][None, :], params['lastb'][None, :]],
                            axis=0).astype(jnp.float32)                      # (L*10+2, D)
    return dict(item_emb=params['item_emb'], pos_emb=params['pos_emb'],
                wslab=wslab, vslab=vslab)


@jax.jit
def sasrec_forward(packed, log_seqs, pos_seqs, neg_seqs):
    B, T = log_seqs.shape
    D = HIDDEN
    L = NUM_BLOCKS
    BT = B * T
    NB = NUM_PARALLEL        # 2 on v7x (2 TensorCores), 1 on v5e/v6e
    BTb = BT // NB

    item_w = packed['item_emb']
    pos_w = packed['pos_emb']

    # --- plain-JAX glue: data-dependent embedding gathers stay outside the kernel ---
    seqs = item_w[log_seqs] * (D ** 0.5)                                     # (B, T, D)
    poss = jnp.arange(1, T + 1, dtype=jnp.int32)[None, :] * (log_seqs != 0).astype(jnp.int32)
    seqs = seqs + pos_w[poss]
    # emb_dropout / attn dropout / FFN dropouts are identity in eval mode.
    x2d = seqs.reshape(BT, D).astype(jnp.float32)
    tmask = (log_seqs != 0).astype(jnp.float32).reshape(BT, 1)               # timeline mask
    pn = jnp.stack([item_w[pos_seqs], item_w[neg_seqs]], axis=0).reshape(2, BT, D)
    pn = pn.astype(jnp.float32)

    in_specs = [
        pl.BlockSpec((BTb, 1), lambda i: (i, 0)),                # timeline mask (batch block)
        pl.BlockSpec((BTb, D), lambda i: (i, 0)),                # x (batch block)
        pl.BlockSpec((2, BTb, D), lambda i: (0, i, 0)),          # stacked pos/neg embeddings
        pl.BlockSpec((L, 6, D, D), lambda i: (0, 0, 0, 0)),      # weight slab (replicated)
        pl.BlockSpec((L * VEC_PER_LAYER + 2, D), lambda i: (0, 0)),  # vector slab (replicated)
    ]
    out_specs = pl.BlockSpec((1, 2, OUT_LANES), lambda i: (i, 0, 0))
    out_shape = jax.ShapeDtypeStruct((NB, 2, OUT_LANES), jnp.float32)

    out = pl.pallas_call(
        sasrec_kernel,
        grid=(NB,),
        in_specs=in_specs,
        out_specs=out_specs,
        out_shape=out_shape,
        compiler_params=pltpu.CompilerParams(dimension_semantics=("parallel",)),
    )(tmask, x2d, pn, packed['wslab'], packed['vslab'])

    pos_logits = out[:, 0, :BTb].reshape(B, T)
    neg_logits = out[:, 1, :BTb].reshape(B, T)
    return pos_logits, neg_logits


if __name__ == "__main__":
    key = jax.random.PRNGKey(0)
    pkey, k1, k2, k3 = jax.random.split(key, 4)

    params = init_params(pkey)
    packed = pack_params(params)          # one-time packing, outside the jitted per-call path

    log_seqs = jax.random.randint(k1, (BATCH, MAXLEN), 0, ITEM_NUM + 1, dtype=jnp.int32)
    log_seqs = log_seqs.at[:, :2].set(0)  # leading padding exercises the timeline-mask path
    pos_seqs = jax.random.randint(k2, (BATCH, MAXLEN), 1, ITEM_NUM + 1, dtype=jnp.int32)
    neg_seqs = jax.random.randint(k3, (BATCH, MAXLEN), 1, ITEM_NUM + 1, dtype=jnp.int32)

    pos_logits, neg_logits = sasrec_forward(packed, log_seqs, pos_seqs, neg_seqs)
    jax.block_until_ready((pos_logits, neg_logits))

    assert pos_logits.shape == (BATCH, MAXLEN)
    assert neg_logits.shape == (BATCH, MAXLEN)
    assert jnp.all(jnp.isfinite(pos_logits)) and jnp.all(jnp.isfinite(neg_logits))
    print("KERNEL_OK")
</pallas_src>

<mosaic_0001>
module attributes {stable_mosaic.version = 11 : i64} {
  func.func @sasrec_kernel(%arg0: i32, %arg1: memref<16x1xf32, #tpu.memory_space<vmem>>, %arg2: memref<16x32xf32, #tpu.memory_space<vmem>>, %arg3: memref<2x16x32xf32, #tpu.memory_space<vmem>>, %arg4: memref<2x6x32x32xbf16, #tpu.memory_space<vmem>>, %arg5: memref<22x32xf32, #tpu.memory_space<vmem>>, %arg6: memref<1x2x128xf32, #tpu.memory_space<vmem>>) attributes {dimension_semantics = [#tpu.dimension_semantics<parallel>], iteration_bounds = array<i64: 1>, scalar_prefetch = 0 : i64, scratch_operands = 0 : i64, tpu.core_type = #tpu.core_type<tc>, window_params = [{transform_indices = @transform_0, window_bounds = array<i64: 16, 1>}, {transform_indices = @transform_1, window_bounds = array<i64: 16, 32>}, {transform_indices = @transform_2, window_bounds = array<i64: 2, 16, 32>}, {pipeline_mode = #tpu.pipeline_mode<synchronous>, transform_indices = @transform_3, window_bounds = array<i64: 2, 6, 32, 32>}, {pipeline_mode = #tpu.pipeline_mode<synchronous>, transform_indices = @transform_4, window_bounds = array<i64: 22, 32>}, {transform_indices = @transform_5, window_bounds = array<i64: 1, 2, 128>}]} {
    %c0 = arith.constant 0 : index
    %c0_0 = arith.constant 0 : index
    %0 = vector.load %arg2[%c0, %c0_0] : memref<16x32xf32, #tpu.memory_space<vmem>>, vector<16x32xf32>
    %c0_1 = arith.constant 0 : index
    %c0_2 = arith.constant 0 : index
    %1 = vector.load %arg1[%c0_1, %c0_2] : memref<16x1xf32, #tpu.memory_space<vmem>>, vector<16x1xf32>
    %2 = tpu.iota {dimensions = array<i32: 0>} : vector<8x8xi32>
    %3 = tpu.iota {dimensions = array<i32: 1>} : vector<8x8xi32>
    %4 = arith.cmpi sle, %3, %2 : vector<8x8xi32>
    %cst = arith.constant 0.000000e+00 : f32
    %cst_3 = arith.constant -1.000000e+30 : f32
    %5 = vector.broadcast %cst : f32 to vector<8x8xf32>
    %6 = vector.broadcast %cst_3 : f32 to vector<8x8xf32>
    %7 = arith.select %4, %5, %6 : vector<8x8xi1>, vector<8x8xf32>
    %c0_4 = arith.constant 0 : index
    %c0_5 = arith.constant 0 : index
    %8 = vector.load %arg5[%c0_4, %c0_5] : memref<22x32xf32, #tpu.memory_space<vmem>>, vector<22x32xf32>
    %9 = vector.broadcast %1 : vector<16x1xf32> to vector<16x32xf32>
    %10 = arith.mulf %0, %9 : vector<16x32xf32>
    %c0_6 = arith.constant 0 : index
    %c0_7 = arith.constant 0 : index
    %c0_8 = arith.constant 0 : index
    %c0_9 = arith.constant 0 : index
    %11 = vector.load %arg4[%c0_6, %c0_7, %c0_8, %c0_9] : memref<2x6x32x32xbf16, #tpu.memory_space<vmem>>, vector<1x1x32x32xbf16>
    %12 = vector.shape_cast %11 : vector<1x1x32x32xbf16> to vector<32x32xbf16>
    %c0_10 = arith.constant 0 : index
    %c1 = arith.constant 1 : index
    %c0_11 = arith.constant 0 : index
    %c0_12 = arith.constant 0 : index
    %13 = vector.load %arg4[%c0_10, %c1, %c0_11, %c0_12] : memref<2x6x32x32xbf16, #tpu.memory_space<vmem>>, vector<1x1x32x32xbf16>
    %14 = vector.shape_cast %13 : vector<1x1x32x32xbf16> to vector<32x32xbf16>
    %c0_13 = arith.constant 0 : index
    %c2 = arith.constant 2 : index
    %c0_14 = arith.constant 0 : index
    %c0_15 = arith.constant 0 : index
    %15 = vector.load %arg4[%c0_13, %c2, %c0_14, %c0_15] : memref<2x6x32x32xbf16, #tpu.memory_space<vmem>>, vector<1x1x32x32xbf16>
    %16 = vector.shape_cast %15 : vector<1x1x32x32xbf16> to vector<32x32xbf16>
    %c0_16 = arith.constant 0 : index
    %c3 = arith.constant 3 : index
    %c0_17 = arith.constant 0 : index
    %c0_18 = arith.constant 0 : index
    %17 = vector.load %arg4[%c0_16, %c3, %c0_17, %c0_18] : memref<2x6x32x32xbf16, #tpu.memory_space<vmem>>, vector<1x1x32x32xbf16>
    %18 = vector.shape_cast %17 : vector<1x1x32x32xbf16> to vector<32x32xbf16>
    %c0_19 = arith.constant 0 : index
    %c4 = arith.constant 4 : index
    %c0_20 = arith.constant 0 : index
    %c0_21 = arith.constant 0 : index
    %19 = vector.load %arg4[%c0_19, %c4, %c0_20, %c0_21] : memref<2x6x32x32xbf16, #tpu.memory_space<vmem>>, vector<1x1x32x32xbf16>
    %20 = vector.shape_cast %19 : vector<1x1x32x32xbf16> to vector<32x32xbf16>
    %c0_22 = arith.constant 0 : index
    %c5 = arith.constant 5 : index
    %c0_23 = arith.constant 0 : index
    %c0_24 = arith.constant 0 : index
    %21 = vector.load %arg4[%c0_22, %c5, %c0_23, %c0_24] : memref<2x6x32x32xbf16, #tpu.memory_space<vmem>>, vector<1x1x32x32xbf16>
    %22 = vector.shape_cast %21 : vector<1x1x32x32xbf16> to vector<32x32xbf16>
    %23 = vector.extract_strided_slice %8 {offsets = [0, 0], sizes = [1, 32], strides = [1, 1]} : vector<22x32xf32> to vector<1x32xf32>
    %24 = vector.extract_strided_slice %8 {offsets = [1, 0], sizes = [1, 32], strides = [1, 1]} : vector<22x32xf32> to vector<1x32xf32>
    %25 = vector.extract_strided_slice %8 {offsets = [2, 0], sizes = [1, 32], strides = [1, 1]} : vector<22x32xf32> to vector<1x32xf32>
    %26 = vector.extract_strided_slice %8 {offsets = [3, 0], sizes = [1, 32], strides = [1, 1]} : vector<22x32xf32> to vector<1x32xf32>
    %27 = vector.extract_strided_slice %8 {offsets = [4, 0], sizes = [1, 32], strides = [1, 1]} : vector<22x32xf32> to vector<1x32xf32>
    %28 = vector.extract_strided_slice %8 {offsets = [5, 0], sizes = [1, 32], strides = [1, 1]} : vector<22x32xf32> to vector<1x32xf32>
    %29 = vector.extract_strided_slice %8 {offsets = [6, 0], sizes = [1, 32], strides = [1, 1]} : vector<22x32xf32> to vector<1x32xf32>
    %30 = vector.extract_strided_slice %8 {offsets = [7, 0], sizes = [1, 32], strides = [1, 1]} : vector<22x32xf32> to vector<1x32xf32>
    %31 = vector.extract_strided_slice %8 {offsets = [8, 0], sizes = [1, 32], strides = [1, 1]} : vector<22x32xf32> to vector<1x32xf32>
    %32 = vector.extract_strided_slice %8 {offsets = [9, 0], sizes = [1, 32], strides = [1, 1]} : vector<22x32xf32> to vector<1x32xf32>
    %cst_25 = arith.constant dense<0.000000e+00> : vector<16xf32>
    %33 = vector.multi_reduction <add>, %10, %cst_25 [1] : vector<16x32xf32> to vector<16xf32>
    %34 = vector.shape_cast %33 : vector<16xf32> to vector<16x1xf32>
    %cst_26 = arith.constant 3.200000e+01 : f32
    %35 = vector.broadcast %cst_26 : f32 to vector<16x1xf32>
    %36 = arith.divf %34, %35 : vector<16x1xf32>
    %37 = vector.broadcast %36 : vector<16x1xf32> to vector<16x32xf32>
    %38 = arith.subf %10, %37 : vector<16x32xf32>
    %39 = arith.mulf %38, %38 : vector<16x32xf32>
    %cst_27 = arith.constant dense<0.000000e+00> : vector<16xf32>
    %40 = vector.multi_reduction <add>, %39, %cst_27 [1] : vector<16x32xf32> to vector<16xf32>
    %41 = vector.shape_cast %40 : vector<16xf32> to vector<16x1xf32>
    %cst_28 = arith.constant 3.200000e+01 : f32
    %42 = vector.broadcast %cst_28 : f32 to vector<16x1xf32>
    %43 = arith.divf %41, %42 : vector<16x1xf32>
    %44 = vector.broadcast %36 : vector<16x1xf32> to vector<16x32xf32>
    %45 = arith.subf %10, %44 : vector<16x32xf32>
    %cst_29 = arith.constant 9.99999993E-9 : f32
    %46 = vector.broadcast %cst_29 : f32 to vector<16x1xf32>
    %47 = arith.addf %43, %46 : vector<16x1xf32>
    %48 = math.rsqrt %47 : vector<16x1xf32>
    %49 = vector.broadcast %48 : vector<16x1xf32> to vector<16x32xf32>
    %50 = arith.mulf %45, %49 : vector<16x32xf32>
    %51 = vector.broadcast %23 : vector<1x32xf32> to vector<16x32xf32>
    %52 = arith.mulf %50, %51 : vector<16x32xf32>
    %53 = vector.broadcast %24 : vector<1x32xf32> to vector<16x32xf32>
    %54 = arith.addf %52, %53 : vector<16x32xf32>
    %55 = arith.truncf %54 : vector<16x32xf32> to vector<16x32xbf16>
    %cst_30 = arith.constant dense<0.000000e+00> : vector<16x32xf32>
    %56 = tpu.matmul %55, %12, %cst_30 {dimension_numbers = #tpu.dot_dimension_numbers<[1], [0], [0], [1], [0, 0, 1, 1], [], []>} : vector<16x32xbf16>, vector<32x32xbf16>, vector<16x32xf32> -> vector<16x32xf32>
    %57 = vector.broadcast %25 : vector<1x32xf32> to vector<16x32xf32>
    %58 = arith.addf %56, %57 : vector<16x32xf32>
    %59 = arith.truncf %10 : vector<16x32xf32> to vector<16x32xbf16>
    %cst_31 = arith.constant dense<0.000000e+00> : vector<16x32xf32>
    %60 = tpu.matmul %59, %14, %cst_31 {dimension_numbers = #tpu.dot_dimension_numbers<[1], [0], [0], [1], [0, 0, 1, 1], [], []>} : vector<16x32xbf16>, vector<32x32xbf16>, vector<16x32xf32> -> vector<16x32xf32>
    %61 = vector.broadcast %26 : vector<1x32xf32> to vector<16x32xf32>
    %62 = arith.addf %60, %61 : vector<16x32xf32>
    %63 = arith.truncf %10 : vector<16x32xf32> to vector<16x32xbf16>
    %cst_32 = arith.constant dense<0.000000e+00> : vector<16x32xf32>
    %64 = tpu.matmul %63, %16, %cst_32 {dimension_numbers = #tpu.dot_dimension_numbers<[1], [0], [0], [1], [0, 0, 1, 1], [], []>} : vector<16x32xbf16>, vector<32x32xbf16>, vector<16x32xf32> -> vector<16x32xf32>
    %65 = vector.broadcast %27 : vector<1x32xf32> to vector<16x32xf32>
    %66 = arith.addf %64, %65 : vector<16x32xf32>
    %67 = vector.shape_cast %58 : vector<16x32xf32> to vector<2x8x32xf32>
    %68 = vector.shape_cast %62 : vector<16x32xf32> to vector<2x8x32xf32>
    %69 = vector.shape_cast %66 : vector<16x32xf32> to vector<2x8x32xf32>
    %70 = vector.extract_strided_slice %67 {offsets = [0, 0, 0], sizes = [2, 8, 16], strides = [1, 1, 1]} : vector<2x8x32xf32> to vector<2x8x16xf32>
    %71 = arith.truncf %70 : vector<2x8x16xf32> to vector<2x8x16xbf16>
    %72 = vector.extract_strided_slice %68 {offsets = [0, 0, 0], sizes = [2, 8, 16], strides = [1, 1, 1]} : vector<2x8x32xf32> to vector<2x8x16xf32>
    %73 = arith.truncf %72 : vector<2x8x16xf32> to vector<2x8x16xbf16>
    %74 = vector.extract_strided_slice %69 {offsets = [0, 0, 0], sizes = [2, 8, 16], strides = [1, 1, 1]} : vector<2x8x32xf32> to vector<2x8x16xf32>
    %75 = arith.truncf %74 : vector<2x8x16xf32> to vector<2x8x16xbf16>
    "tpu.trace_start"() <{level = 10 : i32, message = "bqd,bkd->bqk"}> : () -> ()
    %cst_33 = arith.constant dense<0.000000e+00> : vector<2x8x8xf32>
    %76 = tpu.matmul %71, %73, %cst_33 {dimension_numbers = #tpu.dot_dimension_numbers<[2], [2], [1], [1], [0, 0, 0, 1, 1, 1], [0], [0]>} : vector<2x8x16xbf16>, vector<2x8x16xbf16>, vector<2x8x8xf32> -> vector<2x8x8xf32>
    "tpu.trace_stop"() : () -> ()
    %cst_34 = arith.constant 2.500000e-01 : f32
    %77 = vector.broadcast %cst_34 : f32 to vector<2x8x8xf32>
    %78 = arith.mulf %76, %77 : vector<2x8x8xf32>
    %79 = vector.shape_cast %7 : vector<8x8xf32> to vector<1x8x8xf32>
    %80 = vector.broadcast %79 : vector<1x8x8xf32> to vector<2x8x8xf32>
    %81 = arith.addf %78, %80 : vector<2x8x8xf32>
    %cst_35 = arith.constant dense<0xFF800000> : vector<2x8xf32>
    %82 = vector.multi_reduction <maximumf>, %81, %cst_35 [2] : vector<2x8x8xf32> to vector<2x8xf32>
    %83 = vector.shape_cast %82 : vector<2x8xf32> to vector<2x8x1xf32>
    %84 = vector.broadcast %83 : vector<2x8x1xf32> to vector<2x8x8xf32>
    %85 = arith.subf %81, %84 : vector<2x8x8xf32>
    %86 = math.exp %85 : vector<2x8x8xf32>
    %cst_36 = arith.constant dense<0.000000e+00> : vector<2x8xf32>
    %87 = vector.multi_reduction <add>, %86, %cst_36 [2] : vector<2x8x8xf32> to vector<2x8xf32>
    %88 = vector.shape_cast %87 : vector<2x8xf32> to vector<2x8x1xf32>
    %89 = vector.broadcast %88 : vector<2x8x1xf32> to vector<2x8x8xf32>
    %90 = arith.divf %86, %89 : vector<2x8x8xf32>
    %91 = arith.truncf %90 : vector<2x8x8xf32> to vector<2x8x8xbf16>
    "tpu.trace_start"() <{level = 10 : i32, message = "bqk,bkd->bqd"}> : () -> ()
    %cst_37 = arith.constant dense<0.000000e+00> : vector<2x8x16xf32>
    %92 = tpu.matmul %91, %75, %cst_37 {dimension_numbers = #tpu.dot_dimension_numbers<[2], [1], [1], [2], [0, 0, 0, 1, 1, 2], [0], [0]>} : vector<2x8x8xbf16>, vector<2x8x16xbf16>, vector<2x8x16xf32> -> vector<2x8x16xf32>
    "tpu.trace_stop"() : () -> ()
    %93 = vector.extract_strided_slice %67 {offsets = [0, 0, 16], sizes = [2, 8, 16], strides = [1, 1, 1]} : vector<2x8x32xf32> to vector<2x8x16xf32>
    %94 = arith.truncf %93 : vector<2x8x16xf32> to vector<2x8x16xbf16>
    %95 = vector.extract_strided_slice %68 {offsets = [0, 0, 16], sizes = [2, 8, 16], strides = [1, 1, 1]} : vector<2x8x32xf32> to vector<2x8x16xf32>
    %96 = arith.truncf %95 : vector<2x8x16xf32> to vector<2x8x16xbf16>
    %97 = vector.extract_strided_slice %69 {offsets = [0, 0, 16], sizes = [2, 8, 16], strides = [1, 1, 1]} : vector<2x8x32xf32> to vector<2x8x16xf32>
    %98 = arith.truncf %97 : vector<2x8x16xf32> to vector<2x8x16xbf16>
    "tpu.trace_start"() <{level = 10 : i32, message = "bqd,bkd->bqk"}> : () -> ()
    %cst_38 = arith.constant dense<0.000000e+00> : vector<2x8x8xf32>
    %99 = tpu.matmul %94, %96, %cst_38 {dimension_numbers = #tpu.dot_dimension_numbers<[2], [2], [1], [1], [0, 0, 0, 1, 1, 1], [0], [0]>} : vector<2x8x16xbf16>, vector<2x8x16xbf16>, vector<2x8x8xf32> -> vector<2x8x8xf32>
    "tpu.trace_stop"() : () -> ()
    %cst_39 = arith.constant 2.500000e-01 : f32
    %100 = vector.broadcast %cst_39 : f32 to vector<2x8x8xf32>
    %101 = arith.mulf %99, %100 : vector<2x8x8xf32>
    %102 = vector.shape_cast %7 : vector<8x8xf32> to vector<1x8x8xf32>
    %103 = vector.broadcast %102 : vector<1x8x8xf32> to vector<2x8x8xf32>
    %104 = arith.addf %101, %103 : vector<2x8x8xf32>
    %cst_40 = arith.constant dense<0xFF800000> : vector<2x8xf32>
    %105 = vector.multi_reduction <maximumf>, %104, %cst_40 [2] : vector<2x8x8xf32> to vector<2x8xf32>
    %106 = vector.shape_cast %105 : vector<2x8xf32> to vector<2x8x1xf32>
    %107 = vector.broadcast %106 : vector<2x8x1xf32> to vector<2x8x8xf32>
    %108 = arith.subf %104, %107 : vector<2x8x8xf32>
    %109 = math.exp %108 : vector<2x8x8xf32>
    %cst_41 = arith.constant dense<0.000000e+00> : vector<2x8xf32>
    %110 = vector.multi_reduction <add>, %109, %cst_41 [2] : vector<2x8x8xf32> to vector<2x8xf32>
    %111 = vector.shape_cast %110 : vector<2x8xf32> to vector<2x8x1xf32>
    %112 = vector.broadcast %111 : vector<2x8x1xf32> to vector<2x8x8xf32>
    %113 = arith.divf %109, %112 : vector<2x8x8xf32>
    %114 = arith.truncf %113 : vector<2x8x8xf32> to vector<2x8x8xbf16>
    "tpu.trace_start"() <{level = 10 : i32, message = "bqk,bkd->bqd"}> : () -> ()
    %cst_42 = arith.constant dense<0.000000e+00> : vector<2x8x16xf32>
    %115 = tpu.matmul %114, %98, %cst_42 {dimension_numbers = #tpu.dot_dimension_numbers<[2], [1], [1], [2], [0, 0, 0, 1, 1, 2], [0], [0]>} : vector<2x8x8xbf16>, vector<2x8x16xbf16>, vector<2x8x16xf32> -> vector<2x8x16xf32>
    "tpu.trace_stop"() : () -> ()
    %116 = tpu.concatenate %92, %115 in 2 : vector<2x8x16xf32>, vector<2x8x16xf32> -> vector<2x8x32xf32>
    %117 = vector.shape_cast %116 : vector<2x8x32xf32> to vector<16x32xf32>
    %118 = arith.truncf %117 : vector<16x32xf32> to vector<16x32xbf16>
    %cst_43 = arith.constant dense<0.000000e+00> : vector<16x32xf32>
    %119 = tpu.matmul %118, %18, %cst_43 {dimension_numbers = #tpu.dot_dimension_numbers<[1], [0], [0], [1], [0, 0, 1, 1], [], []>} : vector<16x32xbf16>, vector<32x32xbf16>, vector<16x32xf32> -> vector<16x32xf32>
    %120 = vector.broadcast %28 : vector<1x32xf32> to vector<16x32xf32>
    %121 = arith.addf %119, %120 : vector<16x32xf32>
    %122 = arith.addf %54, %121 : vector<16x32xf32>
    %cst_44 = arith.constant dense<0.000000e+00> : vector<16xf32>
    %123 = vector.multi_reduction <add>, %122, %cst_44 [1] : vector<16x32xf32> to vector<16xf32>
    %124 = vector.shape_cast %123 : vector<16xf32> to vector<16x1xf32>
    %cst_45 = arith.constant 3.200000e+01 : f32
    %125 = vector.broadcast %cst_45 : f32 to vector<16x1xf32>
    %126 = arith.divf %124, %125 : vector<16x1xf32>
    %127 = vector.broadcast %126 : vector<16x1xf32> to vector<16x32xf32>
    %128 = arith.subf %122, %127 : vector<16x32xf32>
    %129 = arith.mulf %128, %128 : vector<16x32xf32>
    %cst_46 = arith.constant dense<0.000000e+00> : vector<16xf32>
    %130 = vector.multi_reduction <add>, %129, %cst_46 [1] : vector<16x32xf32> to vector<16xf32>
    %131 = vector.shape_cast %130 : vector<16xf32> to vector<16x1xf32>
    %cst_47 = arith.constant 3.200000e+01 : f32
    %132 = vector.broadcast %cst_47 : f32 to vector<16x1xf32>
    %133 = arith.divf %131, %132 : vector<16x1xf32>
    %134 = vector.broadcast %126 : vector<16x1xf32> to vector<16x32xf32>
    %135 = arith.subf %122, %134 : vector<16x32xf32>
    %cst_48 = arith.constant 9.99999993E-9 : f32
    %136 = vector.broadcast %cst_48 : f32 to vector<16x1xf32>
    %137 = arith.addf %133, %136 : vector<16x1xf32>
    %138 = math.rsqrt %137 : vector<16x1xf32>
    %139 = vector.broadcast %138 : vector<16x1xf32> to vector<16x32xf32>
    %140 = arith.mulf %135, %139 : vector<16x32xf32>
    %141 = vector.broadcast %29 : vector<1x32xf32> to vector<16x32xf32>
    %142 = arith.mulf %140, %141 : vector<16x32xf32>
    %143 = vector.broadcast %30 : vector<1x32xf32> to vector<16x32xf32>
    %144 = arith.addf %142, %143 : vector<16x32xf32>
    %145 = arith.truncf %144 : vector<16x32xf32> to vector<16x32xbf16>
    %cst_49 = arith.constant dense<0.000000e+00> : vector<16x32xf32>
    %146 = tpu.matmul %145, %20, %cst_49 {dimension_numbers = #tpu.dot_dimension_numbers<[1], [0], [0], [1], [0, 0, 1, 1], [], []>} : vector<16x32xbf16>, vector<32x32xbf16>, vector<16x32xf32> -> vector<16x32xf32>
    %147 = vector.broadcast %31 : vector<1x32xf32> to vector<16x32xf32>
    %148 = arith.addf %146, %147 : vector<16x32xf32>
    %cst_50 = arith.constant 0.000000e+00 : f32
    %149 = vector.broadcast %cst_50 : f32 to vector<16x32xf32>
    %150 = arith.maximumf %148, %149 : vector<16x32xf32>
    %151 = arith.truncf %150 : vector<16x32xf32> to vector<16x32xbf16>
    %cst_51 = arith.constant dense<0.000000e+00> : vector<16x32xf32>
    %152 = tpu.matmul %151, %22, %cst_51 {dimension_numbers = #tpu.dot_dimension_numbers<[1], [0], [0], [1], [0, 0, 1, 1], [], []>} : vector<16x32xbf16>, vector<32x32xbf16>, vector<16x32xf32> -> vector<16x32xf32>
    %153 = arith.addf %144, %152 : vector<16x32xf32>
    %154 = vector.broadcast %32 : vector<1x32xf32> to vector<16x32xf32>
    %155 = arith.addf %153, %154 : vector<16x32xf32>
    %156 = vector.broadcast %1 : vector<16x1xf32> to vector<16x32xf32>
    %157 = arith.mulf %155, %156 : vector<16x32xf32>
    %c1_52 = arith.constant 1 : index
    %c0_53 = arith.constant 0 : index
    %c0_54 = arith.constant 0 : index
    %c0_55 = arith.constant 0 : index
    %158 = vector.load %arg4[%c1_52, %c0_53, %c0_54, %c0_55] : memref<2x6x32x32xbf16, #tpu.memory_space<vmem>>, vector<1x1x32x32xbf16>
    %159 = vector.shape_cast %158 : vector<1x1x32x32xbf16> to vector<32x32xbf16>
    %c1_56 = arith.constant 1 : index
    %c1_57 = arith.constant 1 : index
    %c0_58 = arith.constant 0 : index
    %c0_59 = arith.constant 0 : index
    %160 = vector.load %arg4[%c1_56, %c1_57, %c0_58, %c0_59] : memref<2x6x32x32xbf16, #tpu.memory_space<vmem>>, vector<1x1x32x32xbf16>
    %161 = vector.shape_cast %160 : vector<1x1x32x32xbf16> to vector<32x32xbf16>
    %c1_60 = arith.constant 1 : index
    %c2_61 = arith.constant 2 : index
    %c0_62 = arith.constant 0 : index
    %c0_63 = arith.constant 0 : index
    %162 = vector.load %arg4[%c1_60, %c2_61, %c0_62, %c0_63] : memref<2x6x32x32xbf16, #tpu.memory_space<vmem>>, vector<1x1x32x32xbf16>
    %163 = vector.shape_cast %162 : vector<1x1x32x32xbf16> to vector<32x32xbf16>
    %c1_64 = arith.constant 1 : index
    %c3_65 = arith.constant 3 : index
    %c0_66 = arith.constant 0 : index
    %c0_67 = arith.constant 0 : index
    %164 = vector.load %arg4[%c1_64, %c3_65, %c0_66, %c0_67] : memref<2x6x32x32xbf16, #tpu.memory_space<vmem>>, vector<1x1x32x32xbf16>
    %165 = vector.shape_cast %164 : vector<1x1x32x32xbf16> to vector<32x32xbf16>
    %c1_68 = arith.constant 1 : index
    %c4_69 = arith.constant 4 : index
    %c0_70 = arith.constant 0 : index
    %c0_71 = arith.constant 0 : index
    %166 = vector.load %arg4[%c1_68, %c4_69, %c0_70, %c0_71] : memref<2x6x32x32xbf16, #tpu.memory_space<vmem>>, vector<1x1x32x32xbf16>
    %167 = vector.shape_cast %166 : vector<1x1x32x32xbf16> to vector<32x32xbf16>
    %c1_72 = arith.constant 1 : index
    %c5_73 = arith.constant 5 : index
    %c0_74 = arith.constant 0 : index
    %c0_75 = arith.constant 0 : index
    %168 = vector.load %arg4[%c1_72, %c5_73, %c0_74, %c0_75] : memref<2x6x32x32xbf16, #tpu.memory_space<vmem>>, vector<1x1x32x32xbf16>
    %169 = vector.shape_cast %168 : vector<1x1x32x32xbf16> to vector<32x32xbf16>
    %170 = vector.extract_strided_slice %8 {offsets = [10, 0], sizes = [1, 32], strides = [1, 1]} : vector<22x32xf32> to vector<1x32xf32>
    %171 = vector.extract_strided_slice %8 {offsets = [11, 0], sizes = [1, 32], strides = [1, 1]} : vector<22x32xf32> to vector<1x32xf32>
    %172 = vector.extract_strided_slice %8 {offsets = [12, 0], sizes = [1, 32], strides = [1, 1]} : vector<22x32xf32> to vector<1x32xf32>
    %173 = vector.extract_strided_slice %8 {offsets = [13, 0], sizes = [1, 32], strides = [1, 1]} : vector<22x32xf32> to vector<1x32xf32>
    %174 = vector.extract_strided_slice %8 {offsets = [14, 0], sizes = [1, 32], strides = [1, 1]} : vector<22x32xf32> to vector<1x32xf32>
    %175 = vector.extract_strided_slice %8 {offsets = [15, 0], sizes = [1, 32], strides = [1, 1]} : vector<22x32xf32> to vector<1x32xf32>
    %176 = vector.extract_strided_slice %8 {offsets = [16, 0], sizes = [1, 32], strides = [1, 1]} : vector<22x32xf32> to vector<1x32xf32>
    %177 = vector.extract_strided_slice %8 {offsets = [17, 0], sizes = [1, 32], strides = [1, 1]} : vector<22x32xf32> to vector<1x32xf32>
    %178 = vector.extract_strided_slice %8 {offsets = [18, 0], sizes = [1, 32], strides = [1, 1]} : vector<22x32xf32> to vector<1x32xf32>
    %179 = vector.extract_strided_slice %8 {offsets = [19, 0], sizes = [1, 32], strides = [1, 1]} : vector<22x32xf32> to vector<1x32xf32>
    %cst_76 = arith.constant dense<0.000000e+00> : vector<16xf32>
    %180 = vector.multi_reduction <add>, %157, %cst_76 [1] : vector<16x32xf32> to vector<16xf32>
    %181 = vector.shape_cast %180 : vector<16xf32> to vector<16x1xf32>
    %cst_77 = arith.constant 3.200000e+01 : f32
    %182 = vector.broadcast %cst_77 : f32 to vector<16x1xf32>
    %183 = arith.divf %181, %182 : vector<16x1xf32>
    %184 = vector.broadcast %183 : vector<16x1xf32> to vector<16x32xf32>
    %185 = arith.subf %157, %184 : vector<16x32xf32>
    %186 = arith.mulf %185, %185 : vector<16x32xf32>
    %cst_78 = arith.constant dense<0.000000e+00> : vector<16xf32>
    %187 = vector.multi_reduction <add>, %186, %cst_78 [1] : vector<16x32xf32> to vector<16xf32>
    %188 = vector.shape_cast %187 : vector<16xf32> to vector<16x1xf32>
    %cst_79 = arith.constant 3.200000e+01 : f32
    %189 = vector.broadcast %cst_79 : f32 to vector<16x1xf32>
    %190 = arith.divf %188, %189 : vector<16x1xf32>
    %191 = vector.broadcast %183 : vector<16x1xf32> to vector<16x32xf32>
    %192 = arith.subf %157, %191 : vector<16x32xf32>
    %cst_80 = arith.constant 9.99999993E-9 : f32
    %193 = vector.broadcast %cst_80 : f32 to vector<16x1xf32>
    %194 = arith.addf %190, %193 : vector<16x1xf32>
    %195 = math.rsqrt %194 : vector<16x1xf32>
    %196 = vector.broadcast %195 : vector<16x1xf32> to vector<16x32xf32>
    %197 = arith.mulf %192, %196 : vector<16x32xf32>
    %198 = vector.broadcast %170 : vector<1x32xf32> to vector<16x32xf32>
    %199 = arith.mulf %197, %198 : vector<16x32xf32>
    %200 = vector.broadcast %171 : vector<1x32xf32> to vector<16x32xf32>
    %201 = arith.addf %199, %200 : vector<16x32xf32>
    %202 = arith.truncf %201 : vector<16x32xf32> to vector<16x32xbf16>
    %cst_81 = arith.constant dense<0.000000e+00> : vector<16x32xf32>
    %203 = tpu.matmul %202, %159, %cst_81 {dimension_numbers = #tpu.dot_dimension_numbers<[1], [0], [0], [1], [0, 0, 1, 1], [], []>} : vector<16x32xbf16>, vector<32x32xbf16>, vector<16x32xf32> -> vector<16x32xf32>
    %204 = vector.broadcast %172 : vector<1x32xf32> to vector<16x32xf32>
    %205 = arith.addf %203, %204 : vector<16x32xf32>
    %206 = arith.truncf %157 : vector<16x32xf32> to vector<16x32xbf16>
    %cst_82 = arith.constant dense<0.000000e+00> : vector<16x32xf32>
    %207 = tpu.matmul %206, %161, %cst_82 {dimension_numbers = #tpu.dot_dimension_numbers<[1], [0], [0], [1], [0, 0, 1, 1], [], []>} : vector<16x32xbf16>, vector<32x32xbf16>, vector<16x32xf32> -> vector<16x32xf32>
    %208 = vector.broadcast %173 : vector<1x32xf32> to vector<16x32xf32>
    %209 = arith.addf %207, %208 : vector<16x32xf32>
    %210 = arith.truncf %157 : vector<16x32xf32> to vector<16x32xbf16>
    %cst_83 = arith.constant dense<0.000000e+00> : vector<16x32xf32>
    %211 = tpu.matmul %210, %163, %cst_83 {dimension_numbers = #tpu.dot_dimension_numbers<[1], [0], [0], [1], [0, 0, 1, 1], [], []>} : vector<16x32xbf16>, vector<32x32xbf16>, vector<16x32xf32> -> vector<16x32xf32>
    %212 = vector.broadcast %174 : vector<1x32xf32> to vector<16x32xf32>
    %213 = arith.addf %211, %212 : vector<16x32xf32>
    %214 = vector.shape_cast %205 : vector<16x32xf32> to vector<2x8x32xf32>
    %215 = vector.shape_cast %209 : vector<16x32xf32> to vector<2x8x32xf32>
    %216 = vector.shape_cast %213 : vector<16x32xf32> to vector<2x8x32xf32>
    %217 = vector.extract_strided_slice %214 {offsets = [0, 0, 0], sizes = [2, 8, 16], strides = [1, 1, 1]} : vector<2x8x32xf32> to vector<2x8x16xf32>
    %218 = arith.truncf %217 : vector<2x8x16xf32> to vector<2x8x16xbf16>
    %219 = vector.extract_strided_slice %215 {offsets = [0, 0, 0], sizes = [2, 8, 16], strides = [1, 1, 1]} : vector<2x8x32xf32> to vector<2x8x16xf32>
    %220 = arith.truncf %219 : vector<2x8x16xf32> to vector<2x8x16xbf16>
    %221 = vector.extract_strided_slice %216 {offsets = [0, 0, 0], sizes = [2, 8, 16], strides = [1, 1, 1]} : vector<2x8x32xf32> to vector<2x8x16xf32>
    %222 = arith.truncf %221 : vector<2x8x16xf32> to vector<2x8x16xbf16>
    "tpu.trace_start"() <{level = 10 : i32, message = "bqd,bkd->bqk"}> : () -> ()
    %cst_84 = arith.constant dense<0.000000e+00> : vector<2x8x8xf32>
    %223 = tpu.matmul %218, %220, %cst_84 {dimension_numbers = #tpu.dot_dimension_numbers<[2], [2], [1], [1], [0, 0, 0, 1, 1, 1], [0], [0]>} : vector<2x8x16xbf16>, vector<2x8x16xbf16>, vector<2x8x8xf32> -> vector<2x8x8xf32>
    "tpu.trace_stop"() : () -> ()
    %cst_85 = arith.constant 2.500000e-01 : f32
    %224 = vector.broadcast %cst_85 : f32 to vector<2x8x8xf32>
    %225 = arith.mulf %223, %224 : vector<2x8x8xf32>
    %226 = vector.shape_cast %7 : vector<8x8xf32> to vector<1x8x8xf32>
    %227 = vector.broadcast %226 : vector<1x8x8xf32> to vector<2x8x8xf32>
    %228 = arith.addf %225, %227 : vector<2x8x8xf32>
    %cst_86 = arith.constant dense<0xFF800000> : vector<2x8xf32>
    %229 = vector.multi_reduction <maximumf>, %228, %cst_86 [2] : vector<2x8x8xf32> to vector<2x8xf32>
    %230 = vector.shape_cast %229 : vector<2x8xf32> to vector<2x8x1xf32>
    %231 = vector.broadcast %230 : vector<2x8x1xf32> to vector<2x8x8xf32>
    %232 = arith.subf %228, %231 : vector<2x8x8xf32>
    %233 = math.exp %232 : vector<2x8x8xf32>
    %cst_87 = arith.constant dense<0.000000e+00> : vector<2x8xf32>
    %234 = vector.multi_reduction <add>, %233, %cst_87 [2] : vector<2x8x8xf32> to vector<2x8xf32>
    %235 = vector.shape_cast %234 : vector<2x8xf32> to vector<2x8x1xf32>
    %236 = vector.broadcast %235 : vector<2x8x1xf32> to vector<2x8x8xf32>
    %237 = arith.divf %233, %236 : vector<2x8x8xf32>
    %238 = arith.truncf %237 : vector<2x8x8xf32> to vector<2x8x8xbf16>
    "tpu.trace_start"() <{level = 10 : i32, message = "bqk,bkd->bqd"}> : () -> ()
    %cst_88 = arith.constant dense<0.000000e+00> : vector<2x8x16xf32>
    %239 = tpu.matmul %238, %222, %cst_88 {dimension_numbers = #tpu.dot_dimension_numbers<[2], [1], [1], [2], [0, 0, 0, 1, 1, 2], [0], [0]>} : vector<2x8x8xbf16>, vector<2x8x16xbf16>, vector<2x8x16xf32> -> vector<2x8x16xf32>
    "tpu.trace_stop"() : () -> ()
    %240 = vector.extract_strided_slice %214 {offsets = [0, 0, 16], sizes = [2, 8, 16], strides = [1, 1, 1]} : vector<2x8x32xf32> to vector<2x8x16xf32>
    %241 = arith.truncf %240 : vector<2x8x16xf32> to vector<2x8x16xbf16>
    %242 = vector.extract_strided_slice %215 {offsets = [0, 0, 16], sizes = [2, 8, 16], strides = [1, 1, 1]} : vector<2x8x32xf32> to vector<2x8x16xf32>
    %243 = arith.truncf %242 : vector<2x8x16xf32> to vector<2x8x16xbf16>
    %244 = vector.extract_strided_slice %216 {offsets = [0, 0, 16], sizes = [2, 8, 16], strides = [1, 1, 1]} : vector<2x8x32xf32> to vector<2x8x16xf32>
    %245 = arith.truncf %244 : vector<2x8x16xf32> to vector<2x8x16xbf16>
    "tpu.trace_start"() <{level = 10 : i32, message = "bqd,bkd->bqk"}> : () -> ()
    %cst_89 = arith.constant dense<0.000000e+00> : vector<2x8x8xf32>
    %246 = tpu.matmul %241, %243, %cst_89 {dimension_numbers = #tpu.dot_dimension_numbers<[2], [2], [1], [1], [0, 0, 0, 1, 1, 1], [0], [0]>} : vector<2x8x16xbf16>, vector<2x8x16xbf16>, vector<2x8x8xf32> -> vector<2x8x8xf32>
    "tpu.trace_stop"() : () -> ()
    %cst_90 = arith.constant 2.500000e-01 : f32
    %247 = vector.broadcast %cst_90 : f32 to vector<2x8x8xf32>
    %248 = arith.mulf %246, %247 : vector<2x8x8xf32>
    %249 = vector.shape_cast %7 : vector<8x8xf32> to vector<1x8x8xf32>
    %250 = vector.broadcast %249 : vector<1x8x8xf32> to vector<2x8x8xf32>
    %251 = arith.addf %248, %250 : vector<2x8x8xf32>
    %cst_91 = arith.constant dense<0xFF800000> : vector<2x8xf32>
    %252 = vector.multi_reduction <maximumf>, %251, %cst_91 [2] : vector<2x8x8xf32> to vector<2x8xf32>
    %253 = vector.shape_cast %252 : vector<2x8xf32> to vector<2x8x1xf32>
    %254 = vector.broadcast %253 : vector<2x8x1xf32> to vector<2x8x8xf32>
    %255 = arith.subf %251, %254 : vector<2x8x8xf32>
    %256 = math.exp %255 : vector<2x8x8xf32>
    %cst_92 = arith.constant dense<0.000000e+00> : vector<2x8xf32>
    %257 = vector.multi_reduction <add>, %256, %cst_92 [2] : vector<2x8x8xf32> to vector<2x8xf32>
    %258 = vector.shape_cast %257 : vector<2x8xf32> to vector<2x8x1xf32>
    %259 = vector.broadcast %258 : vector<2x8x1xf32> to vector<2x8x8xf32>
    %260 = arith.divf %256, %259 : vector<2x8x8xf32>
    %261 = arith.truncf %260 : vector<2x8x8xf32> to vector<2x8x8xbf16>
    "tpu.trace_start"() <{level = 10 : i32, message = "bqk,bkd->bqd"}> : () -> ()
    %cst_93 = arith.constant dense<0.000000e+00> : vector<2x8x16xf32>
    %262 = tpu.matmul %261, %245, %cst_93 {dimension_numbers = #tpu.dot_dimension_numbers<[2], [1], [1], [2], [0, 0, 0, 1, 1, 2], [0], [0]>} : vector<2x8x8xbf16>, vector<2x8x16xbf16>, vector<2x8x16xf32> -> vector<2x8x16xf32>
    "tpu.trace_stop"() : () -> ()
    %263 = tpu.concatenate %239, %262 in 2 : vector<2x8x16xf32>, vector<2x8x16xf32> -> vector<2x8x32xf32>
    %264 = vector.shape_cast %263 : vector<2x8x32xf32> to vector<16x32xf32>
    %265 = arith.truncf %264 : vector<16x32xf32> to vector<16x32xbf16>
    %cst_94 = arith.constant dense<0.000000e+00> : vector<16x32xf32>
    %266 = tpu.matmul %265, %165, %cst_94 {dimension_numbers = #tpu.dot_dimension_numbers<[1], [0], [0], [1], [0, 0, 1, 1], [], []>} : vector<16x32xbf16>, vector<32x32xbf16>, vector<16x32xf32> -> vector<16x32xf32>
    %267 = vector.broadcast %175 : vector<1x32xf32> to vector<16x32xf32>
    %268 = arith.addf %266, %267 : vector<16x32xf32>
    %269 = arith.addf %201, %268 : vector<16x32xf32>
    %cst_95 = arith.constant dense<0.000000e+00> : vector<16xf32>
    %270 = vector.multi_reduction <add>, %269, %cst_95 [1] : vector<16x32xf32> to vector<16xf32>
    %271 = vector.shape_cast %270 : vector<16xf32> to vector<16x1xf32>
    %cst_96 = arith.constant 3.200000e+01 : f32
    %272 = vector.broadcast %cst_96 : f32 to vector<16x1xf32>
    %273 = arith.divf %271, %272 : vector<16x1xf32>
    %274 = vector.broadcast %273 : vector<16x1xf32> to vector<16x32xf32>
    %275 = arith.subf %269, %274 : vector<16x32xf32>
    %276 = arith.mulf %275, %275 : vector<16x32xf32>
    %cst_97 = arith.constant dense<0.000000e+00> : vector<16xf32>
    %277 = vector.multi_reduction <add>, %276, %cst_97 [1] : vector<16x32xf32> to vector<16xf32>
    %278 = vector.shape_cast %277 : vector<16xf32> to vector<16x1xf32>
    %cst_98 = arith.constant 3.200000e+01 : f32
    %279 = vector.broadcast %cst_98 : f32 to vector<16x1xf32>
    %280 = arith.divf %278, %279 : vector<16x1xf32>
    %281 = vector.broadcast %273 : vector<16x1xf32> to vector<16x32xf32>
    %282 = arith.subf %269, %281 : vector<16x32xf32>
    %cst_99 = arith.constant 9.99999993E-9 : f32
    %283 = vector.broadcast %cst_99 : f32 to vector<16x1xf32>
    %284 = arith.addf %280, %283 : vector<16x1xf32>
    %285 = math.rsqrt %284 : vector<16x1xf32>
    %286 = vector.broadcast %285 : vector<16x1xf32> to vector<16x32xf32>
    %287 = arith.mulf %282, %286 : vector<16x32xf32>
    %288 = vector.broadcast %176 : vector<1x32xf32> to vector<16x32xf32>
    %289 = arith.mulf %287, %288 : vector<16x32xf32>
    %290 = vector.broadcast %177 : vector<1x32xf32> to vector<16x32xf32>
    %291 = arith.addf %289, %290 : vector<16x32xf32>
    %292 = arith.truncf %291 : vector<16x32xf32> to vector<16x32xbf16>
    %cst_100 = arith.constant dense<0.000000e+00> : vector<16x32xf32>
    %293 = tpu.matmul %292, %167, %cst_100 {dimension_numbers = #tpu.dot_dimension_numbers<[1], [0], [0], [1], [0, 0, 1, 1], [], []>} : vector<16x32xbf16>, vector<32x32xbf16>, vector<16x32xf32> -> vector<16x32xf32>
    %294 = vector.broadcast %178 : vector<1x32xf32> to vector<16x32xf32>
    %295 = arith.addf %293, %294 : vector<16x32xf32>
    %cst_101 = arith.constant 0.000000e+00 : f32
    %296 = vector.broadcast %cst_101 : f32 to vector<16x32xf32>
    %297 = arith.maximumf %295, %296 : vector<16x32xf32>
    %298 = arith.truncf %297 : vector<16x32xf32> to vector<16x32xbf16>
    %cst_102 = arith.constant dense<0.000000e+00> : vector<16x32xf32>
    %299 = tpu.matmul %298, %169, %cst_102 {dimension_numbers = #tpu.dot_dimension_numbers<[1], [0], [0], [1], [0, 0, 1, 1], [], []>} : vector<16x32xbf16>, vector<32x32xbf16>, vector<16x32xf32> -> vector<16x32xf32>
    %300 = arith.addf %291, %299 : vector<16x32xf32>
    %301 = vector.broadcast %179 : vector<1x32xf32> to vector<16x32xf32>
    %302 = arith.addf %300, %301 : vector<16x32xf32>
    %303 = vector.broadcast %1 : vector<16x1xf32> to vector<16x32xf32>
    %304 = arith.mulf %302, %303 : vector<16x32xf32>
    %305 = vector.extract_strided_slice %8 {offsets = [20, 0], sizes = [1, 32], strides = [1, 1]} : vector<22x32xf32> to vector<1x32xf32>
    %306 = vector.extract_strided_slice %8 {offsets = [21, 0], sizes = [1, 32], strides = [1, 1]} : vector<22x32xf32> to vector<1x32xf32>
    %cst_103 = arith.constant dense<0.000000e+00> : vector<16xf32>
    %307 = vector.multi_reduction <add>, %304, %cst_103 [1] : vector<16x32xf32> to vector<16xf32>
    %308 = vector.shape_cast %307 : vector<16xf32> to vector<16x1xf32>
    %cst_104 = arith.constant 3.200000e+01 : f32
    %309 = vector.broadcast %cst_104 : f32 to vector<16x1xf32>
    %310 = arith.divf %308, %309 : vector<16x1xf32>
    %311 = vector.broadcast %310 : vector<16x1xf32> to vector<16x32xf32>
    %312 = arith.subf %304, %311 : vector<16x32xf32>
    %313 = arith.mulf %312, %312 : vector<16x32xf32>
    %cst_105 = arith.constant dense<0.000000e+00> : vector<16xf32>
    %314 = vector.multi_reduction <add>, %313, %cst_105 [1] : vector<16x32xf32> to vector<16xf32>
    %315 = vector.shape_cast %314 : vector<16xf32> to vector<16x1xf32>
    %cst_106 = arith.constant 3.200000e+01 : f32
    %316 = vector.broadcast %cst_106 : f32 to vector<16x1xf32>
    %317 = arith.divf %315, %316 : vector<16x1xf32>
    %318 = vector.broadcast %310 : vector<16x1xf32> to vector<16x32xf32>
    %319 = arith.subf %304, %318 : vector<16x32xf32>
    %cst_107 = arith.constant 9.99999993E-9 : f32
    %320 = vector.broadcast %cst_107 : f32 to vector<16x1xf32>
    %321 = arith.addf %317, %320 : vector<16x1xf32>
    %322 = math.rsqrt %321 : vector<16x1xf32>
    %323 = vector.broadcast %322 : vector<16x1xf32> to vector<16x32xf32>
    %324 = arith.mulf %319, %323 : vector<16x32xf32>
    %325 = vector.broadcast %305 : vector<1x32xf32> to vector<16x32xf32>
    %326 = arith.mulf %324, %325 : vector<16x32xf32>
    %327 = vector.broadcast %306 : vector<1x32xf32> to vector<16x32xf32>
    %328 = arith.addf %326, %327 : vector<16x32xf32>
    %c0_108 = arith.constant 0 : index
    %c0_109 = arith.constant 0 : index
    %c0_110 = arith.constant 0 : index
    %329 = vector.load %arg3[%c0_108, %c0_109, %c0_110] : memref<2x16x32xf32, #tpu.memory_space<vmem>>, vector<2x16x32xf32>
    %330 = vector.shape_cast %328 : vector<16x32xf32> to vector<1x16x32xf32>
    %331 = vector.broadcast %330 : vector<1x16x32xf32> to vector<2x16x32xf32>
    %332 = arith.mulf %329, %331 : vector<2x16x32xf32>
    %cst_111 = arith.constant dense<0.000000e+00> : vector<2x16xf32>
    %333 = vector.multi_reduction <add>, %332, %cst_111 [2] : vector<2x16x32xf32> to vector<2x16xf32>
    %cst_112 = arith.constant 0.000000e+00 : f32
    %334 = vector.broadcast %cst_112 : f32 to vector<2x112xf32>
    %335 = tpu.concatenate %333, %334 in 1 : vector<2x16xf32>, vector<2x112xf32> -> vector<2x128xf32>
    %c0_113 = arith.constant 0 : index
    %c0_114 = arith.constant 0 : index
    %c0_115 = arith.constant 0 : index
    %336 = vector.load %arg6[%c0_113, %c0_114, %c0_115] : memref<1x2x128xf32, #tpu.memory_space<vmem>>, vector<1x2x128xf32>
    %337 = vector.shape_cast %336 : vector<1x2x128xf32> to vector<2x128xf32>
    %338 = vector.shape_cast %335 : vector<2x128xf32> to vector<1x2x128xf32>
    tpu.vector_store %arg6[%c0_113, %c0_114, %c0_115], %338 {strides = array<i32>} : memref<1x2x128xf32, #tpu.memory_space<vmem>>, vector<1x2x128xf32>,
    return
  }
  func.func @transform_0(%arg0: i32) -> (i32, i32) {
    %c0_i32 = arith.constant 0 : i32
    %c0_i32_0 = arith.constant 0 : i32
    return %arg0, %c0_i32 : i32, i32
  }
  func.func @transform_1(%arg0: i32) -> (i32, i32) {
    %c0_i32 = arith.constant 0 : i32
    %c0_i32_0 = arith.constant 0 : i32
    return %arg0, %c0_i32 : i32, i32
  }
  func.func @transform_2(%arg0: i32) -> (i32, i32, i32) {
    %c0_i32 = arith.constant 0 : i32
    %c0_i32_0 = arith.constant 0 : i32
    %c0_i32_1 = arith.constant 0 : i32
    return %c0_i32, %arg0, %c0_i32_0 : i32, i32, i32
  }
  func.func @transform_3(%arg0: i32) -> (i32, i32, i32, i32) {
    %c0_i32 = arith.constant 0 : i32
    %c0_i32_0 = arith.constant 0 : i32
    %c0_i32_1 = arith.constant 0 : i32
    %c0_i32_2 = arith.constant 0 : i32
    %c0_i32_3 = arith.constant 0 : i32
    return %c0_i32, %c0_i32_0, %c0_i32_1, %c0_i32_2 : i32, i32, i32, i32
  }
  func.func @transform_4(%arg0: i32) -> (i32, i32) {
    %c0_i32 = arith.constant 0 : i32
    %c0_i32_0 = arith.constant 0 : i32
    %c0_i32_1 = arith.constant 0 : i32
    return %c0_i32, %c0_i32_0 : i32, i32
  }
  func.func @transform_5(%arg0: i32) -> (i32, i32, i32) {
    %c0_i32 = arith.constant 0 : i32
    %c0_i32_0 = arith.constant 0 : i32
    %c0_i32_1 = arith.constant 0 : i32
    return %arg0, %c0_i32, %c0_i32_0 : i32, i32, i32
  }
}

</mosaic_0001>

<llo_original>
// kernel: squeeze.2
$region0: #{squeeze.2}
  %s0 = inlined_call_operand.vmem [shape: f32[16], index: 0, kind: input, shape index: {}]
  %s1 = inlined_call_operand.hbm [shape: f32[2,8], index: 1, kind: output, shape index: {}]
  $region1: #{squeeze.2} parent=0
    #allocation0 [shape = 'u8[1024]{0}', space=vmem, size = 0x400, scoped, tag = 'operand span for operand 1']
    #allocation1 [shape = 's32[1]{0}', space=sflag, size = 0x4, scoped, tag = 'scoped memory for squeeze.2']
    #allocation2 [shape = 'u8[4096]{0}', space=vmem, size = 0x1000, scoped, tag = 'scoped mem for output reshape']
    #allocation3 [shape = 'u8[4096]{0}', space=vmem, size = 0x1000, scoped, tag = 'scoped mem for input reshape']
    %2 = vsyncpa [#allocation1], 0
    %s4 = sshllo.u32 0, 1
    %v5 = vld [vmem:[%s0] sm:%s4]
    %6 = vst [vmem:[#allocation3] sm:%s4] %v5
    %v7 = vld [vmem:[#allocation3] sm:$0x1]
    %vm8 = vcmask 64512
    %9 = vst.msk [vmem:[#allocation2] sm:$0x1] %vm8, %v7
    %v10 = vld [vmem:[#allocation3] sm:$0x1]
    %11 = vrot.lane.b32.xlu0 %v10, 120
    %v12 = vpop.permute.xlu0 %11
    %vm13 = vcmask 64512
    %s14 = scalar_lea.vmem [#allocation2], 1
    %15 = vst.msk [vmem:[%s14] sm:$0x1] %vm13, %v12
    %s17 = sshllo.u32 0, 2
    %v19 = vld [vmem:[#allocation2] sm:%s17]
    %s20 = sshllo.u32 0, 2
    %21 = vst [vmem:[#allocation0] sm:%s20] %v19
    %s23 = ssub.s32 32, 32
    %24 = vsyncadd [#allocation1], %s23
    %s26 = sshll.u32 [#allocation0], 4
    %s27 = int_to_ptr.vmem [resolvable:$true] %s26
    %29 = dma.vmem_to_hbm [thread:$0]  %s27, 32, %s1, [#allocation1]
    %30 = dma.done [#allocation1], 32
    %31 = vsyncpa [#allocation1], 1

// kernel: sasrec_forward.1
$region0: #{sasrec_forward.1}
  #allocation0 [shape = 'u32[]', space=smem, size = 0x4, offset = 0x4, fixed_abs, tag = 'smem constant byte address 0x4 - core index']
  #allocation1 [shape = 'u32[144,128]{1,0:T(1,128)}', space=vmem, size = 0x12000, scoped, tag = 'internal scratch']
  %s0 = inlined_call_operand.vmem [shape: f32[16,1], index: 0, kind: input, shape index: {}]
  %s1 = inlined_call_operand.vmem [shape: f32[16,32], index: 1, kind: input, shape index: {}]
  %s2 = inlined_call_operand.vmem [shape: f32[2,16,32], index: 2, kind: input, shape index: {}]
  %s3 = inlined_call_operand.vmem [shape: bf16[2,6,32,32], index: 3, kind: input, shape index: {}]
  %s4 = inlined_call_operand.vmem [shape: f32[22,32], index: 4, kind: input, shape index: {}]
  %s5 = inlined_call_operand.vmem [shape: f32[1,2,128], index: 5, kind: output, shape index: {}]
  %s6 = sld [smem:[#allocation0]]
  $region30: #{sasrec_forward.1} parent=0
    _
  %s8 = ssub.s32 1, %s6
  %s9 = scalar_select 0, %s8, %s6
  // Predicated region
  $region2: #{sasrec_forward.1} parent=0 // pred_check
    _
  $region3: #{sasrec_forward.1} parent=0 // pred_check_branch
    %11 = sbr.rel (0) target = $region5
  $region4: #{sasrec_forward.1} parent=0 // pred_region
    _
  $region5: #{sasrec_forward.1} parent=0 // pred_fallthru
    _
  // Predicated region
  $region6: #{sasrec_forward.1} parent=0 // pred_check
    _
  $region7: #{sasrec_forward.1} parent=0 // pred_check_branch
    %13 = sbr.rel (0) target = $region9
  $region8: #{sasrec_forward.1} parent=0 // pred_region
    _
  $region9: #{sasrec_forward.1} parent=0 // pred_fallthru
    _
  // Predicated region
  $region10: #{sasrec_forward.1} parent=0 // pred_check
    _
  $region11: #{sasrec_forward.1} parent=0 // pred_check_branch
    %15 = sbr.rel (0) target = $region13
  $region12: #{sasrec_forward.1} parent=0 // pred_region
    _
  $region13: #{sasrec_forward.1} parent=0 // pred_fallthru
    _
  // Predicated region
  $region14: #{sasrec_forward.1} parent=0 // pred_check
    _
  $region15: #{sasrec_forward.1} parent=0 // pred_check_branch
    %17 = sbr.rel (0) target = $region17
  $region16: #{sasrec_forward.1} parent=0 // pred_region
    _
  $region17: #{sasrec_forward.1} parent=0 // pred_fallthru
    _
  // Predicated region
  $region18: #{sasrec_forward.1} parent=0 // pred_check
    _
  $region19: #{sasrec_forward.1} parent=0 // pred_check_branch
    %19 = sbr.rel (0) target = $region21
  $region20: #{sasrec_forward.1} parent=0 // pred_region
    _
  $region21: #{sasrec_forward.1} parent=0 // pred_fallthru
    _
  %v21 = vld [vmem:[%s1] sm:$0xff]
  %v22 = vld [vmem:[%s1 + $0x8] sm:$0xff]
  %v23 = vld [vmem:[%s0] sm:$0xff]
  %v24 = vld [vmem:[%s0 + $0x8] sm:$0xff]
  %v25 = vlaneseq
  %v26 = vshrl.u32 %v25, 7
  %v27 = vlaneseq
  %v28 = vand.u32 %v27, 127
  %vm29 = vcmp.le.s32.totalorder %v28, %v26
  %v30 = vsel %vm29, 0.0, -1e+30
  %v31 = vld [vmem:[%s4] sm:$0xff]
  %v32 = vld [vmem:[%s4 + $0x8] sm:$0xff]
  %v33 = vld [vmem:[%s4 + $0x10] sm:$0x3f]
  %35 = vset.pattern.permute.xlu0 0
  %36 = vperm.xlu0 %35, %v23
  %v37 = vpop.permute.xlu0 %36
  %40 = vset.pattern.permute.xlu0 0
  %41 = vperm.xlu0 %40, %v24
  %v42 = vpop.permute.xlu0 %41
  %v44 = vmul.f32 %v21, %v37
  %v45 = vmul.f32 %v22, %v42
  %v46 = vld [vmem:[%s3] sm:$0xf]
  %v47 = vld [vmem:[%s3 + $0x4] sm:$0xf]
  %v48 = vld [vmem:[%s3 + $0x8] sm:$0xf]
  %v49 = vld [vmem:[%s3 + $0xc] sm:$0xf]
  %s50 = scalar_lea.vmem %s3, 16
  %v51 = vld [vmem:[%s50] sm:$0xf]
  %v52 = vld [vmem:[%s50 + $0x4] sm:$0xf]
  %v53 = vld [vmem:[%s50 + $0x8] sm:$0xf]
  %v54 = vld [vmem:[%s50 + $0xc] sm:$0xf]
  %s55 = scalar_lea.vmem %s3, 32
  %v56 = vld [vmem:[%s55] sm:$0xf]
  %v57 = vld [vmem:[%s55 + $0x4] sm:$0xf]
  %v58 = vld [vmem:[%s55 + $0x8] sm:$0xf]
  %v59 = vld [vmem:[%s55 + $0xc] sm:$0xf]
  %s60 = scalar_lea.vmem %s3, 48
  %v61 = vld [vmem:[%s60] sm:$0xf]
  %v62 = vld [vmem:[%s60 + $0x4] sm:$0xf]
  %v63 = vld [vmem:[%s60 + $0x8] sm:$0xf]
  %v64 = vld [vmem:[%s60 + $0xc] sm:$0xf]
  %s65 = scalar_lea.vmem %s3, 64
  %v66 = vld [vmem:[%s65] sm:$0xf]
  %v67 = vld [vmem:[%s65 + $0x4] sm:$0xf]
  %v68 = vld [vmem:[%s65 + $0x8] sm:$0xf]
  %v69 = vld [vmem:[%s65 + $0xc] sm:$0xf]
  %s70 = scalar_lea.vmem %s3, 80
  %v71 = vld [vmem:[%s70] sm:$0xf]
  %v72 = vld [vmem:[%s70 + $0x4] sm:$0xf]
  %v73 = vld [vmem:[%s70 + $0x8] sm:$0xf]
  %v74 = vld [vmem:[%s70 + $0xc] sm:$0xf]
  %vm75 = vcmask 261120
  %v76 = vsel %vm75, %v44, 0.0
  %77 = vadd.xlane.f32.xlu0 %v76
  %v78 = vpop.xlane.xlu0 %77
  %v79 = vsel %vm75, %v45, 0.0
  %80 = vadd.xlane.f32.xlu0 %v79
  %v81 = vpop.xlane.xlu0 %80
  %v82 = vrcp.pop 32.0
  %v83 = vmul.f32 %v78, %v82
  %v84 = vmul.f32 %v81, %v82
  %v85 = vsub.f32 %v44, %v83
  %v86 = vsub.f32 %v45, %v84
  %v87 = vmul.f32 %v85, %v85
  %v88 = vmul.f32 %v86, %v86
  %v89 = vsel %vm75, %v87, 0.0
  %90 = vadd.xlane.f32.xlu0 %v89
  %v91 = vpop.xlane.xlu0 %90
  %v92 = vsel %vm75, %v88, 0.0
  %93 = vadd.xlane.f32.xlu0 %v92
  %v94 = vpop.xlane.xlu0 %93
  %v95 = vmul.f32 %v91, %v82
  %v96 = vmul.f32 %v94, %v82
  %v97 = vadd.f32 %v95, 1e-08
  %v98 = vadd.f32 %v96, 1e-08
  %v99 = vrsqrt.pop %v97
  %v100 = vrsqrt.pop %v98
  %v101 = vmul.f32 %v85, %v99
  %v102 = vmul.f32 %v86, %v100
  %v103 = vlaneseq
  %v104 = vshrl.u32 %v103, 7
  %v105 = vsub.s32 0, %v104
  %v106 = vrot.slane %v31, %v105
  %v107 = vmul.f32 %v101, %v106
  %v108 = vmul.f32 %v102, %v106
  %v109 = vlaneseq
  %v110 = vshrl.u32 %v109, 7
  %v111 = vsub.s32 1, %v110
  %v112 = vrot.slane %v31, %v111
  %v113 = vadd.f32 %v107, %v112
  %v114 = vadd.f32 %v108, %v112
  %v115 = vpack.c.bf16 %v114, %v113
  %v116 = vlaneseq
  %v117 = vshrl.u32 %v116, 7
  %v118 = vsub.s32 2, %v117
  %v119 = vrot.slane %v31, %v118
  %v124 = vunpack.c.l.b16 %v46
  %v125 = vunpack.c.l.b16 %v47
  %v126 = vunpack.c.l.b16 %v48
  %v127 = vunpack.c.l.b16 %v49
  %v128 = vpack.c.b16 %v125, %v124
  %v129 = vpack.c.b16 %v127, %v126
  %v133 = vsel %vm75, %v115, 0
  %135 = vmatprep.subr.bf16.mxu0 0
  %136 = vmatpush1.bf16.msra.mxu0 %v128
  %137 = vmatprep.subr.bf16.mxu0 0
  %138 = vmatpush1.bf16.msra.mxu0 %v129
  %139 = vmatprep.subr.bf16.mxu0 0
  %140 = vmatpush1.bf16.msra.mxu0 0
  %141 = vmatprep.subr.bf16.mxu0 0
  %142 = vmatpush1.bf16.msra.mxu0 0
  %143 = vmatprep.subr.bf16.mxu0 0
  %144 = vmatpush1.bf16.msra.mxu0 0
  %145 = vmatprep.subr.bf16.mxu0 0
  %146 = vmatpush1.bf16.msra.mxu0 0
  %147 = vmatprep.subr.bf16.mxu0 0
  %148 = vmatpush1.bf16.msra.mxu0 0
  %149 = vmatprep.subr.bf16.mxu0 0
  %150 = vmatpush1.bf16.msra.mxu0 0
  %151 = vmatprep.subr.bf16.mxu0 0
  %152 = vmatpush1.bf16.msra.mxu0 0
  %153 = vmatprep.subr.bf16.mxu0 0
  %154 = vmatpush1.bf16.msra.mxu0 0
  %155 = vmatprep.subr.bf16.mxu0 0
  %156 = vmatpush1.bf16.msra.mxu0 0
  %157 = vmatprep.subr.bf16.mxu0 0
  %158 = vmatpush1.bf16.msra.mxu0 0
  %159 = vmatprep.subr.bf16.mxu0 0
  %160 = vmatpush1.bf16.msra.mxu0 0
  %161 = vmatprep.subr.bf16.mxu0 0
  %162 = vmatpush1.bf16.msra.mxu0 0
  %163 = vmatprep.subr.bf16.mxu0 0
  %164 = vmatpush1.bf16.msra.mxu0 0
  %165 = vmatprep.subr.bf16.mxu0 0
  %166 = vmatpush1.bf16.msra.mxu0 0
  %167 = vmatprep.mubr.bf16.mxu0 0
  %168 = vmatmul.mubr.bf16.gmra.mrb[0].mxu0 %v133
  %v169 = vpop.f32.mrb[0].mxu0
  %v170 = vadd.f32 %v119, %v169
  %v171 = vpop.f32.mrb[0].mxu0
  %v172 = vpop.f32.mrb[0].mxu0
  %v173 = vadd.f32 %v119, %v172
  %v174 = vpop.f32.mrb[0].mxu0
  %175 = vdwg.mxu0
  %v176 = vpack.c.bf16 %v45, %v44
  %v177 = vlaneseq
  %v178 = vshrl.u32 %v177, 7
  %v179 = vsub.s32 3, %v178
  %v180 = vrot.slane %v31, %v179
  %v185 = vunpack.c.l.b16 %v51
  %v186 = vunpack.c.l.b16 %v52
  %v187 = vunpack.c.l.b16 %v53
  %v188 = vunpack.c.l.b16 %v54
  %v189 = vpack.c.b16 %v186, %v185
  %v190 = vpack.c.b16 %v188, %v187
  %v194 = vsel %vm75, %v176, 0
  %196 = vmatprep.subr.bf16.mxu0 0
  %197 = vmatpush1.bf16.msra.mxu0 %v189
  %198 = vmatprep.subr.bf16.mxu0 0
  %199 = vmatpush1.bf16.msra.mxu0 %v190
  %200 = vmatprep.subr.bf16.mxu0 0
  %201 = vmatpush1.bf16.msra.mxu0 0
  %202 = vmatprep.subr.bf16.mxu0 0
  %203 = vmatpush1.bf16.msra.mxu0 0
  %204 = vmatprep.subr.bf16.mxu0 0
  %205 = vmatpush1.bf16.msra.mxu0 0
  %206 = vmatprep.subr.bf16.mxu0 0
  %207 = vmatpush1.bf16.msra.mxu0 0
  %208 = vmatprep.subr.bf16.mxu0 0
  %209 = vmatpush1.bf16.msra.mxu0 0
  %210 = vmatprep.subr.bf16.mxu0 0
  %211 = vmatpush1.bf16.msra.mxu0 0
  %212 = vmatprep.subr.bf16.mxu0 0
  %213 = vmatpush1.bf16.msra.mxu0 0
  %214 = vmatprep.subr.bf16.mxu0 0
  %215 = vmatpush1.bf16.msra.mxu0 0
  %216 = vmatprep.subr.bf16.mxu0 0
  %217 = vmatpush1.bf16.msra.mxu0 0
  %218 = vmatprep.subr.bf16.mxu0 0
  %219 = vmatpush1.bf16.msra.mxu0 0
  %220 = vmatprep.subr.bf16.mxu0 0
  %221 = vmatpush1.bf16.msra.mxu0 0
  %222 = vmatprep.subr.bf16.mxu0 0
  %223 = vmatpush1.bf16.msra.mxu0 0
  %224 = vmatprep.subr.bf16.mxu0 0
  %225 = vmatpush1.bf16.msra.mxu0 0
  %226 = vmatprep.subr.bf16.mxu0 0
  %227 = vmatpush1.bf16.msra.mxu0 0
  %228 = vmatprep.mubr.bf16.mxu0 0
  %229 = vmatmul.mubr.bf16.gmra.mrb[0].mxu0 %v194
  %v230 = vpop.f32.mrb[0].mxu0
  %v231 = vadd.f32 %v180, %v230
  %v232 = vpop.f32.mrb[0].mxu0
  %v233 = vpop.f32.mrb[0].mxu0
  %v234 = vadd.f32 %v180, %v233
  %v235 = vpop.f32.mrb[0].mxu0
  %236 = vdwg.mxu0
  %v237 = vlaneseq
  %v238 = vshrl.u32 %v237, 7
  %v239 = vsub.s32 4, %v238
  %v240 = vrot.slane %v31, %v239
  %v245 = vunpack.c.l.b16 %v56
  %v246 = vunpack.c.l.b16 %v57
  %v247 = vunpack.c.l.b16 %v58
  %v248 = vunpack.c.l.b16 %v59
  %v249 = vpack.c.b16 %v246, %v245
  %v250 = vpack.c.b16 %v248, %v247
  %253 = vmatprep.subr.bf16.mxu0 0
  %254 = vmatpush1.bf16.msra.mxu0 %v249
  %255 = vmatprep.subr.bf16.mxu0 0
  %256 = vmatpush1.bf16.msra.mxu0 %v250
  %257 = vmatprep.subr.bf16.mxu0 0
  %258 = vmatpush1.bf16.msra.mxu0 0
  %259 = vmatprep.subr.bf16.mxu0 0
  %260 = vmatpush1.bf16.msra.mxu0 0
  %261 = vmatprep.subr.bf16.mxu0 0
  %262 = vmatpush1.bf16.msra.mxu0 0
  %263 = vmatprep.subr.bf16.mxu0 0
  %264 = vmatpush1.bf16.msra.mxu0 0
  %265 = vmatprep.subr.bf16.mxu0 0
  %266 = vmatpush1.bf16.msra.mxu0 0
  %267 = vmatprep.subr.bf16.mxu0 0
  %268 = vmatpush1.bf16.msra.mxu0 0
  %269 = vmatprep.subr.bf16.mxu0 0
  %270 = vmatpush1.bf16.msra.mxu0 0
  %271 = vmatprep.subr.bf16.mxu0 0
  %272 = vmatpush1.bf16.msra.mxu0 0
  %273 = vmatprep.subr.bf16.mxu0 0
  %274 = vmatpush1.bf16.msra.mxu0 0
  %275 = vmatprep.subr.bf16.mxu0 0
  %276 = vmatpush1.bf16.msra.mxu0 0
  %277 = vmatprep.subr.bf16.mxu0 0
  %278 = vmatpush1.bf16.msra.mxu0 0
  %279 = vmatprep.subr.bf16.mxu0 0
  %280 = vmatpush1.bf16.msra.mxu0 0
  %281 = vmatprep.subr.bf16.mxu0 0
  %282 = vmatpush1.bf16.msra.mxu0 0
  %283 = vmatprep.subr.bf16.mxu0 0
  %284 = vmatpush1.bf16.msra.mxu0 0
  %285 = vmatprep.mubr.bf16.mxu0 0
  %286 = vmatmul.mubr.bf16.gmra.mrb[0].mxu0 %v194
  %v287 = vpop.f32.mrb[0].mxu0
  %v288 = vadd.f32 %v240, %v287
  %v289 = vpop.f32.mrb[0].mxu0
  %v290 = vpop.f32.mrb[0].mxu0
  %v291 = vadd.f32 %v240, %v290
  %v292 = vpop.f32.mrb[0].mxu0
  %293 = vdwg.mxu0
  %v294 = vpack.c.bf16 %v170, %v170
  %v295 = vpack.c.bf16 %v173, %v173
  %v296 = vpack.c.bf16 %v231, %v231
  %v297 = vpack.c.bf16 %v234, %v234
  %v298 = vpack.c.bf16 %v288, %v288
  %v299 = vpack.c.bf16 %v291, %v291
  %vm300 = vcmask 130048
  %v302 = vsel %vm300, %v294, 0
  %v305 = vsel %vm300, %v296, 0
  %307 = vmatprep.subr.bf16.mxu0 0
  %308 = vmatpush1.bf16.xpose.msra.mxu0 %v305
  %309 = vmatprep.subr.bf16.mxu0 0
  %310 = vmatpush1.bf16.xpose.msra.mxu0 0
  %311 = vmatprep.subr.bf16.mxu0 0
  %312 = vmatpush1.bf16.xpose.msra.mxu0 0
  %313 = vmatprep.subr.bf16.mxu0 0
  %314 = vmatpush1.bf16.xpose.msra.mxu0 0
  %315 = vmatprep.subr.bf16.mxu0 0
  %316 = vmatpush1.bf16.xpose.msra.mxu0 0
  %317 = vmatprep.subr.bf16.mxu0 0
  %318 = vmatpush1.bf16.xpose.msra.mxu0 0
  %319 = vmatprep.subr.bf16.mxu0 0
  %320 = vmatpush1.bf16.xpose.msra.mxu0 0
  %321 = vmatprep.subr.bf16.mxu0 0
  %322 = vmatpush1.bf16.xpose.msra.mxu0 0
  %323 = vmatprep.subr.bf16.mxu0 0
  %324 = vmatpush1.bf16.xpose.msra.mxu0 0
  %325 = vmatprep.subr.bf16.mxu0 0
  %326 = vmatpush1.bf16.xpose.msra.mxu0 0
  %327 = vmatprep.subr.bf16.mxu0 0
  %328 = vmatpush1.bf16.xpose.msra.mxu0 0
  %329 = vmatprep.subr.bf16.mxu0 0
  %330 = vmatpush1.bf16.xpose.msra.mxu0 0
  %331 = vmatprep.subr.bf16.mxu0 0
  %332 = vmatpush1.bf16.xpose.msra.mxu0 0
  %333 = vmatprep.subr.bf16.mxu0 0
  %334 = vmatpush1.bf16.xpose.msra.mxu0 0
  %335 = vmatprep.subr.bf16.mxu0 0
  %336 = vmatpush1.bf16.xpose.msra.mxu0 0
  %337 = vmatprep.subr.bf16.mxu0 0
  %338 = vmatpush1.bf16.xpose.msra.mxu0 0
  %339 = vmatprep.mubr.bf16.mxu0 0
  %340 = vmatmul.mubr.bf16.gmra.mrb[0].mxu0 %v302
  %v341 = vpop.f32.mrb[0].mxu0
  %v342 = vadd.f32 0.0, %v341
  %v343 = vpop.f32.mrb[0].mxu0
  %v344 = vpop.f32.mrb[0].mxu0
  %v345 = vpop.f32.mrb[0].mxu0
  %346 = vdwg.mxu0
  %v348 = vsel %vm300, %v295, 0
  %v351 = vsel %vm300, %v297, 0
  %353 = vmatprep.subr.bf16.mxu0 0
  %354 = vmatpush1.bf16.xpose.msra.mxu0 %v351
  %355 = vmatprep.subr.bf16.mxu0 0
  %356 = vmatpush1.bf16.xpose.msra.mxu0 0
  %357 = vmatprep.subr.bf16.mxu0 0
  %358 = vmatpush1.bf16.xpose.msra.mxu0 0
  %359 = vmatprep.subr.bf16.mxu0 0
  %360 = vmatpush1.bf16.xpose.msra.mxu0 0
  %361 = vmatprep.subr.bf16.mxu0 0
  %362 = vmatpush1.bf16.xpose.msra.mxu0 0
  %363 = vmatprep.subr.bf16.mxu0 0
  %364 = vmatpush1.bf16.xpose.msra.mxu0 0
  %365 = vmatprep.subr.bf16.mxu0 0
  %366 = vmatpush1.bf16.xpose.msra.mxu0 0
  %367 = vmatprep.subr.bf16.mxu0 0
  %368 = vmatpush1.bf16.xpose.msra.mxu0 0
  %369 = vmatprep.subr.bf16.mxu0 0
  %370 = vmatpush1.bf16.xpose.msra.mxu0 0
  %371 = vmatprep.subr.bf16.mxu0 0
  %372 = vmatpush1.bf16.xpose.msra.mxu0 0
  %373 = vmatprep.subr.bf16.mxu0 0
  %374 = vmatpush1.bf16.xpose.msra.mxu0 0
  %375 = vmatprep.subr.bf16.mxu0 0
  %376 = vmatpush1.bf16.xpose.msra.mxu0 0
  %377 = vmatprep.subr.bf16.mxu0 0
  %378 = vmatpush1.bf16.xpose.msra.mxu0 0
  %379 = vmatprep.subr.bf16.mxu0 0
  %380 = vmatpush1.bf16.xpose.msra.mxu0 0
  %381 = vmatprep.subr.bf16.mxu0 0
  %382 = vmatpush1.bf16.xpose.msra.mxu0 0
  %383 = vmatprep.subr.bf16.mxu0 0
  %384 = vmatpush1.bf16.xpose.msra.mxu0 0
  %385 = vmatprep.mubr.bf16.mxu0 0
  %386 = vmatmul.mubr.bf16.gmra.mrb[0].mxu0 %v348
  %v387 = vpop.f32.mrb[0].mxu0
  %v388 = vadd.f32 0.0, %v387
  %v389 = vpop.f32.mrb[0].mxu0
  %v390 = vpop.f32.mrb[0].mxu0
  %v391 = vpop.f32.mrb[0].mxu0
  %392 = vdwg.mxu0
  %v393 = vmul.f32 %v342, 0.25
  %v394 = vmul.f32 %v388, 0.25
  %v395 = vadd.f32 %v393, %v30
  %v396 = vadd.f32 %v394, %v30
  %vm397 = vcmask 64512
  %v398 = vsel %vm397, %v395, -inf
  %399 = vmax.xlane.f32.xlu0 %v398
  %v400 = vpop.xlane.xlu0 %399
  %v401 = vsel %vm397, %v396, -inf
  %402 = vmax.xlane.f32.xlu0 %v401
  %v403 = vpop.xlane.xlu0 %402
  %v404 = vsub.f32 %v395, %v400
  %v405 = vsub.f32 %v396, %v403
  %v406 = vmul.f32 %v404, 1.442695
  %v407 = vpow.pop %v406
  %v408 = vmul.f32 %v405, 1.442695
  %v409 = vpow.pop %v408
  %v410 = vsel %vm397, %v407, 0.0
  %411 = vadd.xlane.f32.xlu0 %v410
  %v412 = vpop.xlane.xlu0 %411
  %v413 = vsel %vm397, %v409, 0.0
  %414 = vadd.xlane.f32.xlu0 %v413
  %v415 = vpop.xlane.xlu0 %414
  %v416 = vrcp.pop %v412
  %v417 = vmul.f32 %v407, %v416
  %v418 = vrcp.pop %v415
  %v419 = vmul.f32 %v409, %v418
  %v420 = vpack.c.bf16 %v417, %v417
  %v421 = vpack.c.bf16 %v419, %v419
  %v423 = vsel %vm397, %v420, 0
  %vm425 = vcmask 1043456
  %v427 = vsel %vm425, %v298, 0
  %429 = vmatprep.subr.bf16.mxu0 0
  %430 = vmatpush1.bf16.msra.mxu0 %v427
  %431 = vmatprep.subr.bf16.mxu0 0
  %432 = vmatpush1.bf16.msra.mxu0 0
  %433 = vmatprep.subr.bf16.mxu0 0
  %434 = vmatpush1.bf16.msra.mxu0 0
  %435 = vmatprep.subr.bf16.mxu0 0
  %436 = vmatpush1.bf16.msra.mxu0 0
  %437 = vmatprep.subr.bf16.mxu0 0
  %438 = vmatpush1.bf16.msra.mxu0 0
  %439 = vmatprep.subr.bf16.mxu0 0
  %440 = vmatpush1.bf16.msra.mxu0 0
  %441 = vmatprep.subr.bf16.mxu0 0
  %442 = vmatpush1.bf16.msra.mxu0 0
  %443 = vmatprep.subr.bf16.mxu0 0
  %444 = vmatpush1.bf16.msra.mxu0 0
  %445 = vmatprep.subr.bf16.mxu0 0
  %446 = vmatpush1.bf16.msra.mxu0 0
  %447 = vmatprep.subr.bf16.mxu0 0
  %448 = vmatpush1.bf16.msra.mxu0 0
  %449 = vmatprep.subr.bf16.mxu0 0
  %450 = vmatpush1.bf16.msra.mxu0 0
  %451 = vmatprep.subr.bf16.mxu0 0
  %452 = vmatpush1.bf16.msra.mxu0 0
  %453 = vmatprep.subr.bf16.mxu0 0
  %454 = vmatpush1.bf16.msra.mxu0 0
  %455 = vmatprep.subr.bf16.mxu0 0
  %456 = vmatpush1.bf16.msra.mxu0 0
  %457 = vmatprep.subr.bf16.mxu0 0
  %458 = vmatpush1.bf16.msra.mxu0 0
  %459 = vmatprep.subr.bf16.mxu0 0
  %460 = vmatpush1.bf16.msra.mxu0 0
  %461 = vmatprep.mubr.bf16.mxu0 0
  %462 = vmatmul.mubr.bf16.gmra.mrb[0].mxu0 %v423
  %v463 = vpop.f32.mrb[0].mxu0
  %v464 = vadd.f32 0.0, %v463
  %v465 = vpop.f32.mrb[0].mxu0
  %v466 = vpop.f32.mrb[0].mxu0
  %v467 = vpop.f32.mrb[0].mxu0
  %468 = vdwg.mxu0
  %v470 = vsel %vm397, %v421, 0
  %v473 = vsel %vm425, %v299, 0
  %475 = vmatprep.subr.bf16.mxu0 0
  %476 = vmatpush1.bf16.msra.mxu0 %v473
  %477 = vmatprep.subr.bf16.mxu0 0
  %478 = vmatpush1.bf16.msra.mxu0 0
  %479 = vmatprep.subr.bf16.mxu0 0
  %480 = vmatpush1.bf16.msra.mxu0 0
  %481 = vmatprep.subr.bf16.mxu0 0
  %482 = vmatpush1.bf16.msra.mxu0 0
  %483 = vmatprep.subr.bf16.mxu0 0
  %484 = vmatpush1.bf16.msra.mxu0 0
  %485 = vmatprep.subr.bf16.mxu0 0
  %486 = vmatpush1.bf16.msra.mxu0 0
  %487 = vmatprep.subr.bf16.mxu0 0
  %488 = vmatpush1.bf16.msra.mxu0 0
  %489 = vmatprep.subr.bf16.mxu0 0
  %490 = vmatpush1.bf16.msra.mxu0 0
  %491 = vmatprep.subr.bf16.mxu0 0
  %492 = vmatpush1.bf16.msra.mxu0 0
  %493 = vmatprep.subr.bf16.mxu0 0
  %494 = vmatpush1.bf16.msra.mxu0 0
  %495 = vmatprep.subr.bf16.mxu0 0
  %496 = vmatpush1.bf16.msra.mxu0 0
  %497 = vmatprep.subr.bf16.mxu0 0
  %498 = vmatpush1.bf16.msra.mxu0 0
  %499 = vmatprep.subr.bf16.mxu0 0
  %500 = vmatpush1.bf16.msra.mxu0 0
  %501 = vmatprep.subr.bf16.mxu0 0
  %502 = vmatpush1.bf16.msra.mxu0 0
  %503 = vmatprep.subr.bf16.mxu0 0
  %504 = vmatpush1.bf16.msra.mxu0 0
  %505 = vmatprep.subr.bf16.mxu0 0
  %506 = vmatpush1.bf16.msra.mxu0 0
  %507 = vmatprep.mubr.bf16.mxu0 0
  %508 = vmatmul.mubr.bf16.gmra.mrb[0].mxu0 %v470
  %v509 = vpop.f32.mrb[0].mxu0
  %v510 = vadd.f32 0.0, %v509
  %v511 = vpop.f32.mrb[0].mxu0
  %v512 = vpop.f32.mrb[0].mxu0
  %v513 = vpop.f32.mrb[0].mxu0
  %514 = vdwg.mxu0
  %516 = vrot.lane.b32.xlu0 %v294, 112
  %v517 = vpop.permute.xlu0 %516
  %519 = vrot.lane.b32.xlu0 %v296, 112
  %v520 = vpop.permute.xlu0 %519
  %v522 = vsel %vm300, %v517, 0
  %v525 = vsel %vm300, %v520, 0
  %527 = vmatprep.subr.bf16.mxu0 0
  %528 = vmatpush1.bf16.xpose.msra.mxu0 %v525
  %529 = vmatprep.subr.bf16.mxu0 0
  %530 = vmatpush1.bf16.xpose.msra.mxu0 0
  %531 = vmatprep.subr.bf16.mxu0 0
  %532 = vmatpush1.bf16.xpose.msra.mxu0 0
  %533 = vmatprep.subr.bf16.mxu0 0
  %534 = vmatpush1.bf16.xpose.msra.mxu0 0
  %535 = vmatprep.subr.bf16.mxu0 0
  %536 = vmatpush1.bf16.xpose.msra.mxu0 0
  %537 = vmatprep.subr.bf16.mxu0 0
  %538 = vmatpush1.bf16.xpose.msra.mxu0 0
  %539 = vmatprep.subr.bf16.mxu0 0
  %540 = vmatpush1.bf16.xpose.msra.mxu0 0
  %541 = vmatprep.subr.bf16.mxu0 0
  %542 = vmatpush1.bf16.xpose.msra.mxu0 0
  %543 = vmatprep.subr.bf16.mxu0 0
  %544 = vmatpush1.bf16.xpose.msra.mxu0 0
  %545 = vmatprep.subr.bf16.mxu0 0
  %546 = vmatpush1.bf16.xpose.msra.mxu0 0
  %547 = vmatprep.subr.bf16.mxu0 0
  %548 = vmatpush1.bf16.xpose.msra.mxu0 0
  %549 = vmatprep.subr.bf16.mxu0 0
  %550 = vmatpush1.bf16.xpose.msra.mxu0 0
  %551 = vmatprep.subr.bf16.mxu0 0
  %552 = vmatpush1.bf16.xpose.msra.mxu0 0
  %553 = vmatprep.subr.bf16.mxu0 0
  %554 = vmatpush1.bf16.xpose.msra.mxu0 0
  %555 = vmatprep.subr.bf16.mxu0 0
  %556 = vmatpush1.bf16.xpose.msra.mxu0 0
  %557 = vmatprep.subr.bf16.mxu0 0
  %558 = vmatpush1.bf16.xpose.msra.mxu0 0
  %559 = vmatprep.mubr.bf16.mxu0 0
  %560 = vmatmul.mubr.bf16.gmra.mrb[0].mxu0 %v522
  %v561 = vpop.f32.mrb[0].mxu0
  %v562 = vadd.f32 0.0, %v561
  %v563 = vpop.f32.mrb[0].mxu0
  %v564 = vpop.f32.mrb[0].mxu0
  %v565 = vpop.f32.mrb[0].mxu0
  %566 = vdwg.mxu0
  %568 = vrot.lane.b32.xlu0 %v295, 112
  %v569 = vpop.permute.xlu0 %568
  %571 = vrot.lane.b32.xlu0 %v297, 112
  %v572 = vpop.permute.xlu0 %571
  %v574 = vsel %vm300, %v569, 0
  %v577 = vsel %vm300, %v572, 0
  %579 = vmatprep.subr.bf16.mxu0 0
  %580 = vmatpush1.bf16.xpose.msra.mxu0 %v577
  %581 = vmatprep.subr.bf16.mxu0 0
  %582 = vmatpush1.bf16.xpose.msra.mxu0 0
  %583 = vmatprep.subr.bf16.mxu0 0
  %584 = vmatpush1.bf16.xpose.msra.mxu0 0
  %585 = vmatprep.subr.bf16.mxu0 0
  %586 = vmatpush1.bf16.xpose.msra.mxu0 0
  %587 = vmatprep.subr.bf16.mxu0 0
  %588 = vmatpush1.bf16.xpose.msra.mxu0 0
  %589 = vmatprep.subr.bf16.mxu0 0
  %590 = vmatpush1.bf16.xpose.msra.mxu0 0
  %591 = vmatprep.subr.bf16.mxu0 0
  %592 = vmatpush1.bf16.xpose.msra.mxu0 0
  %593 = vmatprep.subr.bf16.mxu0 0
  %594 = vmatpush1.bf16.xpose.msra.mxu0 0
  %595 = vmatprep.subr.bf16.mxu0 0
  %596 = vmatpush1.bf16.xpose.msra.mxu0 0
  %597 = vmatprep.subr.bf16.mxu0 0
  %598 = vmatpush1.bf16.xpose.msra.mxu0 0
  %599 = vmatprep.subr.bf16.mxu0 0
  %600 = vmatpush1.bf16.xpose.msra.mxu0 0
  %601 = vmatprep.subr.bf16.mxu0 0
  %602 = vmatpush1.bf16.xpose.msra.mxu0 0
  %603 = vmatprep.subr.bf16.mxu0 0
  %604 = vmatpush1.bf16.xpose.msra.mxu0 0
  %605 = vmatprep.subr.bf16.mxu0 0
  %606 = vmatpush1.bf16.xpose.msra.mxu0 0
  %607 = vmatprep.subr.bf16.mxu0 0
  %608 = vmatpush1.bf16.xpose.msra.mxu0 0
  %609 = vmatprep.subr.bf16.mxu0 0
  %610 = vmatpush1.bf16.xpose.msra.mxu0 0
  %611 = vmatprep.mubr.bf16.mxu0 0
  %612 = vmatmul.mubr.bf16.gmra.mrb[0].mxu0 %v574
  %v613 = vpop.f32.mrb[0].mxu0
  %v614 = vadd.f32 0.0, %v613
  %v615 = vpop.f32.mrb[0].mxu0
  %v616 = vpop.f32.mrb[0].mxu0
  %v617 = vpop.f32.mrb[0].mxu0
  %618 = vdwg.mxu0
  %v619 = vmul.f32 %v562, 0.25
  %v620 = vmul.f32 %v614, 0.25
  %v621 = vadd.f32 %v619, %v30
  %v622 = vadd.f32 %v620, %v30
  %v623 = vsel %vm397, %v621, -inf
  %624 = vmax.xlane.f32.xlu0 %v623
  %v625 = vpop.xlane.xlu0 %624
  %v626 = vsel %vm397, %v622, -inf
  %627 = vmax.xlane.f32.xlu0 %v626
  %v628 = vpop.xlane.xlu0 %627
  %v629 = vsub.f32 %v621, %v625
  %v630 = vsub.f32 %v622, %v628
  %v631 = vmul.f32 %v629, 1.442695
  %v632 = vpow.pop %v631
  %v633 = vmul.f32 %v630, 1.442695
  %v634 = vpow.pop %v633
  %v635 = vsel %vm397, %v632, 0.0
  %636 = vadd.xlane.f32.xlu0 %v635
  %v637 = vpop.xlane.xlu0 %636
  %v638 = vsel %vm397, %v634, 0.0
  %639 = vadd.xlane.f32.xlu0 %v638
  %v640 = vpop.xlane.xlu0 %639
  %v641 = vrcp.pop %v637
  %v642 = vmul.f32 %v632, %v641
  %v643 = vrcp.pop %v640
  %v644 = vmul.f32 %v634, %v643
  %v645 = vpack.c.bf16 %v642, %v642
  %v646 = vpack.c.bf16 %v644, %v644
  %648 = vrot.lane.b32.xlu0 %v298, 112
  %v649 = vpop.permute.xlu0 %648
  %v651 = vsel %vm397, %v645, 0
  %v654 = vsel %vm425, %v649, 0
  %656 = vmatprep.subr.bf16.mxu0 0
  %657 = vmatpush1.bf16.msra.mxu0 %v654
  %658 = vmatprep.subr.bf16.mxu0 0
  %659 = vmatpush1.bf16.msra.mxu0 0
  %660 = vmatprep.subr.bf16.mxu0 0
  %661 = vmatpush1.bf16.msra.mxu0 0
  %662 = vmatprep.subr.bf16.mxu0 0
  %663 = vmatpush1.bf16.msra.mxu0 0
  %664 = vmatprep.subr.bf16.mxu0 0
  %665 = vmatpush1.bf16.msra.mxu0 0
  %666 = vmatprep.subr.bf16.mxu0 0
  %667 = vmatpush1.bf16.msra.mxu0 0
  %668 = vmatprep.subr.bf16.mxu0 0
  %669 = vmatpush1.bf16.msra.mxu0 0
  %670 = vmatprep.subr.bf16.mxu0 0
  %671 = vmatpush1.bf16.msra.mxu0 0
  %672 = vmatprep.subr.bf16.mxu0 0
  %673 = vmatpush1.bf16.msra.mxu0 0
  %674 = vmatprep.subr.bf16.mxu0 0
  %675 = vmatpush1.bf16.msra.mxu0 0
  %676 = vmatprep.subr.bf16.mxu0 0
  %677 = vmatpush1.bf16.msra.mxu0 0
  %678 = vmatprep.subr.bf16.mxu0 0
  %679 = vmatpush1.bf16.msra.mxu0 0
  %680 = vmatprep.subr.bf16.mxu0 0
  %681 = vmatpush1.bf16.msra.mxu0 0
  %682 = vmatprep.subr.bf16.mxu0 0
  %683 = vmatpush1.bf16.msra.mxu0 0
  %684 = vmatprep.subr.bf16.mxu0 0
  %685 = vmatpush1.bf16.msra.mxu0 0
  %686 = vmatprep.subr.bf16.mxu0 0
  %687 = vmatpush1.bf16.msra.mxu0 0
  %688 = vmatprep.mubr.bf16.mxu0 0
  %689 = vmatmul.mubr.bf16.gmra.mrb[0].mxu0 %v651
  %v690 = vpop.f32.mrb[0].mxu0
  %v691 = vadd.f32 0.0, %v690
  %v692 = vpop.f32.mrb[0].mxu0
  %v693 = vpop.f32.mrb[0].mxu0
  %v694 = vpop.f32.mrb[0].mxu0
  %695 = vdwg.mxu0
  %697 = vrot.lane.b32.xlu0 %v299, 112
  %v698 = vpop.permute.xlu0 %697
  %v700 = vsel %vm397, %v646, 0
  %v703 = vsel %vm425, %v698, 0
  %705 = vmatprep.subr.bf16.mxu0 0
  %706 = vmatpush1.bf16.msra.mxu0 %v703
  %707 = vmatprep.subr.bf16.mxu0 0
  %708 = vmatpush1.bf16.msra.mxu0 0
  %709 = vmatprep.subr.bf16.mxu0 0
  %710 = vmatpush1.bf16.msra.mxu0 0
  %711 = vmatprep.subr.bf16.mxu0 0
  %712 = vmatpush1.bf16.msra.mxu0 0
  %713 = vmatprep.subr.bf16.mxu0 0
  %714 = vmatpush1.bf16.msra.mxu0 0
  %715 = vmatprep.subr.bf16.mxu0 0
  %716 = vmatpush1.bf16.msra.mxu0 0
  %717 = vmatprep.subr.bf16.mxu0 0
  %718 = vmatpush1.bf16.msra.mxu0 0
  %719 = vmatprep.subr.bf16.mxu0 0
  %720 = vmatpush1.bf16.msra.mxu0 0
  %721 = vmatprep.subr.bf16.mxu0 0
  %722 = vmatpush1.bf16.msra.mxu0 0
  %723 = vmatprep.subr.bf16.mxu0 0
  %724 = vmatpush1.bf16.msra.mxu0 0
  %725 = vmatprep.subr.bf16.mxu0 0
  %726 = vmatpush1.bf16.msra.mxu0 0
  %727 = vmatprep.subr.bf16.mxu0 0
  %728 = vmatpush1.bf16.msra.mxu0 0
  %729 = vmatprep.subr.bf16.mxu0 0
  %730 = vmatpush1.bf16.msra.mxu0 0
  %731 = vmatprep.subr.bf16.mxu0 0
  %732 = vmatpush1.bf16.msra.mxu0 0
  %733 = vmatprep.subr.bf16.mxu0 0
  %734 = vmatpush1.bf16.msra.mxu0 0
  %735 = vmatprep.subr.bf16.mxu0 0
  %736 = vmatpush1.bf16.msra.mxu0 0
  %737 = vmatprep.mubr.bf16.mxu0 0
  %738 = vmatmul.mubr.bf16.gmra.mrb[0].mxu0 %v700
  %v739 = vpop.f32.mrb[0].mxu0
  %v740 = vadd.f32 0.0, %v739
  %v741 = vpop.f32.mrb[0].mxu0
  %v742 = vpop.f32.mrb[0].mxu0
  %v743 = vpop.f32.mrb[0].mxu0
  %744 = vdwg.mxu0
  %747 = vrot.lane.b32.xlu0 %v691, 16
  %v748 = vpop.permute.xlu0 %747
  %749 = vrot.lane.b32.xlu0 %v740, 16
  %v750 = vpop.permute.xlu0 %749
  %v753 = vsel %vm300, %v464, %v748
  %v754 = vsel %vm300, %v510, %v750
  %v755 = vpack.c.bf16 %v754, %v753
  %v756 = vlaneseq
  %v757 = vshrl.u32 %v756, 7
  %v758 = vsub.s32 5, %v757
  %v759 = vrot.slane %v31, %v758
  %v764 = vunpack.c.l.b16 %v61
  %v765 = vunpack.c.l.b16 %v62
  %v766 = vunpack.c.l.b16 %v63
  %v767 = vunpack.c.l.b16 %v64
  %v768 = vpack.c.b16 %v765, %v764
  %v769 = vpack.c.b16 %v767, %v766
  %v773 = vsel %vm75, %v755, 0
  %775 = vmatprep.subr.bf16.mxu0 0
  %776 = vmatpush1.bf16.msra.mxu0 %v768
  %777 = vmatprep.subr.bf16.mxu0 0
  %778 = vmatpush1.bf16.msra.mxu0 %v769
  %779 = vmatprep.subr.bf16.mxu0 0
  %780 = vmatpush1.bf16.msra.mxu0 0
  %781 = vmatprep.subr.bf16.mxu0 0
  %782 = vmatpush1.bf16.msra.mxu0 0
  %783 = vmatprep.subr.bf16.mxu0 0
  %784 = vmatpush1.bf16.msra.mxu0 0
  %785 = vmatprep.subr.bf16.mxu0 0
  %786 = vmatpush1.bf16.msra.mxu0 0
  %787 = vmatprep.subr.bf16.mxu0 0
  %788 = vmatpush1.bf16.msra.mxu0 0
  %789 = vmatprep.subr.bf16.mxu0 0
  %790 = vmatpush1.bf16.msra.mxu0 0
  %791 = vmatprep.subr.bf16.mxu0 0
  %792 = vmatpush1.bf16.msra.mxu0 0
  %793 = vmatprep.subr.bf16.mxu0 0
  %794 = vmatpush1.bf16.msra.mxu0 0
  %795 = vmatprep.subr.bf16.mxu0 0
  %796 = vmatpush1.bf16.msra.mxu0 0
  %797 = vmatprep.subr.bf16.mxu0 0
  %798 = vmatpush1.bf16.msra.mxu0 0
  %799 = vmatprep.subr.bf16.mxu0 0
  %800 = vmatpush1.bf16.msra.mxu0 0
  %801 = vmatprep.subr.bf16.mxu0 0
  %802 = vmatpush1.bf16.msra.mxu0 0
  %803 = vmatprep.subr.bf16.mxu0 0
  %804 = vmatpush1.bf16.msra.mxu0 0
  %805 = vmatprep.subr.bf16.mxu0 0
  %806 = vmatpush1.bf16.msra.mxu0 0
  %807 = vmatprep.mubr.bf16.mxu0 0
  %808 = vmatmul.mubr.bf16.gmra.mrb[0].mxu0 %v773
  %v809 = vpop.f32.mrb[0].mxu0
  %v810 = vadd.f32 %v759, %v809
  %v811 = vpop.f32.mrb[0].mxu0
  %v812 = vpop.f32.mrb[0].mxu0
  %v813 = vadd.f32 %v759, %v812
  %v814 = vpop.f32.mrb[0].mxu0
  %815 = vdwg.mxu0
  %v816 = vadd.f32 %v113, %v810
  %v817 = vadd.f32 %v114, %v813
  %v818 = vsel %vm75, %v816, 0.0
  %819 = vadd.xlane.f32.xlu0 %v818
  %v820 = vpop.xlane.xlu0 %819
  %v821 = vsel %vm75, %v817, 0.0
  %822 = vadd.xlane.f32.xlu0 %v821
  %v823 = vpop.xlane.xlu0 %822
  %v824 = vmul.f32 %v820, %v82
  %v825 = vmul.f32 %v823, %v82
  %v826 = vsub.f32 %v816, %v824
  %v827 = vsub.f32 %v817, %v825
  %v828 = vmul.f32 %v826, %v826
  %v829 = vmul.f32 %v827, %v827
  %v830 = vsel %vm75, %v828, 0.0
  %831 = vadd.xlane.f32.xlu0 %v830
  %v832 = vpop.xlane.xlu0 %831
  %v833 = vsel %vm75, %v829, 0.0
  %834 = vadd.xlane.f32.xlu0 %v833
  %v835 = vpop.xlane.xlu0 %834
  %v836 = vmul.f32 %v832, %v82
  %v837 = vmul.f32 %v835, %v82
  %v838 = vadd.f32 %v836, 1e-08
  %v839 = vadd.f32 %v837, 1e-08
  %v840 = vrsqrt.pop %v838
  %v841 = vrsqrt.pop %v839
  %v842 = vmul.f32 %v826, %v840
  %v843 = vmul.f32 %v827, %v841
  %v844 = vlaneseq
  %v845 = vshrl.u32 %v844, 7
  %v846 = vsub.s32 6, %v845
  %v847 = vrot.slane %v31, %v846
  %v848 = vmul.f32 %v842, %v847
  %v849 = vmul.f32 %v843, %v847
  %v850 = vlaneseq
  %v851 = vshrl.u32 %v850, 7
  %v852 = vsub.s32 7, %v851
  %v853 = vrot.slane %v31, %v852
  %v854 = vadd.f32 %v848, %v853
  %v855 = vadd.f32 %v849, %v853
  %v856 = vpack.c.bf16 %v855, %v854
  %v857 = vlaneseq
  %v858 = vshrl.u32 %v857, 7
  %v859 = vsub.s32 0, %v858
  %v860 = vrot.slane %v32, %v859
  %v865 = vunpack.c.l.b16 %v66
  %v866 = vunpack.c.l.b16 %v67
  %v867 = vunpack.c.l.b16 %v68
  %v868 = vunpack.c.l.b16 %v69
  %v869 = vpack.c.b16 %v866, %v865
  %v870 = vpack.c.b16 %v868, %v867
  %v874 = vsel %vm75, %v856, 0
  %876 = vmatprep.subr.bf16.mxu0 0
  %877 = vmatpush1.bf16.msra.mxu0 %v869
  %878 = vmatprep.subr.bf16.mxu0 0
  %879 = vmatpush1.bf16.msra.mxu0 %v870
  %880 = vmatprep.subr.bf16.mxu0 0
  %881 = vmatpush1.bf16.msra.mxu0 0
  %882 = vmatprep.subr.bf16.mxu0 0
  %883 = vmatpush1.bf16.msra.mxu0 0
  %884 = vmatprep.subr.bf16.mxu0 0
  %885 = vmatpush1.bf16.msra.mxu0 0
  %886 = vmatprep.subr.bf16.mxu0 0
  %887 = vmatpush1.bf16.msra.mxu0 0
  %888 = vmatprep.subr.bf16.mxu0 0
  %889 = vmatpush1.bf16.msra.mxu0 0
  %890 = vmatprep.subr.bf16.mxu0 0
  %891 = vmatpush1.bf16.msra.mxu0 0
  %892 = vmatprep.subr.bf16.mxu0 0
  %893 = vmatpush1.bf16.msra.mxu0 0
  %894 = vmatprep.subr.bf16.mxu0 0
  %895 = vmatpush1.bf16.msra.mxu0 0
  %896 = vmatprep.subr.bf16.mxu0 0
  %897 = vmatpush1.bf16.msra.mxu0 0
  %898 = vmatprep.subr.bf16.mxu0 0
  %899 = vmatpush1.bf16.msra.mxu0 0
  %900 = vmatprep.subr.bf16.mxu0 0
  %901 = vmatpush1.bf16.msra.mxu0 0
  %902 = vmatprep.subr.bf16.mxu0 0
  %903 = vmatpush1.bf16.msra.mxu0 0
  %904 = vmatprep.subr.bf16.mxu0 0
  %905 = vmatpush1.bf16.msra.mxu0 0
  %906 = vmatprep.subr.bf16.mxu0 0
  %907 = vmatpush1.bf16.msra.mxu0 0
  %908 = vmatprep.mubr.bf16.mxu0 0
  %909 = vmatmul.mubr.bf16.gmra.mrb[0].mxu0 %v874
  %v910 = vpop.f32.mrb[0].mxu0
  %v911 = vadd.f32 %v860, %v910
  %v912 = vpop.f32.mrb[0].mxu0
  %v913 = vpop.f32.mrb[0].mxu0
  %v914 = vadd.f32 %v860, %v913
  %v915 = vpop.f32.mrb[0].mxu0
  %916 = vdwg.mxu0
  %v917 = vmax.f32 %v911, 0.0
  %v918 = vmax.f32 %v914, 0.0
  %v919 = vpack.c.bf16 %v918, %v917
  %v924 = vunpack.c.l.b16 %v71
  %v925 = vunpack.c.l.b16 %v72
  %v926 = vunpack.c.l.b16 %v73
  %v927 = vunpack.c.l.b16 %v74
  %v928 = vpack.c.b16 %v925, %v924
  %v929 = vpack.c.b16 %v927, %v926
  %v933 = vsel %vm75, %v919, 0
  %935 = vmatprep.subr.bf16.mxu0 0
  %936 = vmatpush1.bf16.msra.mxu0 %v928
  %937 = vmatprep.subr.bf16.mxu0 0
  %938 = vmatpush1.bf16.msra.mxu0 %v929
  %939 = vmatprep.subr.bf16.mxu0 0
  %940 = vmatpush1.bf16.msra.mxu0 0
  %941 = vmatprep.subr.bf16.mxu0 0
  %942 = vmatpush1.bf16.msra.mxu0 0
  %943 = vmatprep.subr.bf16.mxu0 0
  %944 = vmatpush1.bf16.msra.mxu0 0
  %945 = vmatprep.subr.bf16.mxu0 0
  %946 = vmatpush1.bf16.msra.mxu0 0
  %947 = vmatprep.subr.bf16.mxu0 0
  %948 = vmatpush1.bf16.msra.mxu0 0
  %949 = vmatprep.subr.bf16.mxu0 0
  %950 = vmatpush1.bf16.msra.mxu0 0
  %951 = vmatprep.subr.bf16.mxu0 0
  %952 = vmatpush1.bf16.msra.mxu0 0
  %953 = vmatprep.subr.bf16.mxu0 0
  %954 = vmatpush1.bf16.msra.mxu0 0
  %955 = vmatprep.subr.bf16.mxu0 0
  %956 = vmatpush1.bf16.msra.mxu0 0
  %957 = vmatprep.subr.bf16.mxu0 0
  %958 = vmatpush1.bf16.msra.mxu0 0
  %959 = vmatprep.subr.bf16.mxu0 0
  %960 = vmatpush1.bf16.msra.mxu0 0
  %961 = vmatprep.subr.bf16.mxu0 0
  %962 = vmatpush1.bf16.msra.mxu0 0
  %963 = vmatprep.subr.bf16.mxu0 0
  %964 = vmatpush1.bf16.msra.mxu0 0
  %965 = vmatprep.subr.bf16.mxu0 0
  %966 = vmatpush1.bf16.msra.mxu0 0
  %967 = vmatprep.mubr.bf16.mxu0 0
  %968 = vmatmul.mubr.bf16.gmra.mrb[0].mxu0 %v933
  %v969 = vpop.f32.mrb[0].mxu0
  %v970 = vadd.f32 0.0, %v969
  %v971 = vpop.f32.mrb[0].mxu0
  %v972 = vpop.f32.mrb[0].mxu0
  %v973 = vadd.f32 0.0, %v972
  %v974 = vpop.f32.mrb[0].mxu0
  %975 = vdwg.mxu0
  %v976 = vadd.f32 %v854, %v970
  %v977 = vadd.f32 %v855, %v973
  %v978 = vlaneseq
  %v979 = vshrl.u32 %v978, 7
  %v980 = vsub.s32 1, %v979
  %v981 = vrot.slane %v32, %v980
  %v982 = vadd.f32 %v976, %v981
  %v983 = vadd.f32 %v977, %v981
  %v984 = vmul.f32 %v982, %v37
  %v985 = vmul.f32 %v983, %v42
  %s986 = scalar_lea.vmem %s3, 96
  %v987 = vld [vmem:[%s986] sm:$0xf]
  %v988 = vld [vmem:[%s986 + $0x4] sm:$0xf]
  %v989 = vld [vmem:[%s986 + $0x8] sm:$0xf]
  %v990 = vld [vmem:[%s986 + $0xc] sm:$0xf]
  %s991 = scalar_lea.vmem %s3, 112
  %v992 = vld [vmem:[%s991] sm:$0xf]
  %v993 = vld [vmem:[%s991 + $0x4] sm:$0xf]
  %v994 = vld [vmem:[%s991 + $0x8] sm:$0xf]
  %v995 = vld [vmem:[%s991 + $0xc] sm:$0xf]
  %s996 = scalar_lea.vmem %s3, 128
  %v997 = vld [vmem:[%s996] sm:$0xf]
  %v998 = vld [vmem:[%s996 + $0x4] sm:$0xf]
  %v999 = vld [vmem:[%s996 + $0x8] sm:$0xf]
  %v1000 = vld [vmem:[%s996 + $0xc] sm:$0xf]
  %s1001 = scalar_lea.vmem %s3, 144
  %v1002 = vld [vmem:[%s1001] sm:$0xf]
  %v1003 = vld [vmem:[%s1001 + $0x4] sm:$0xf]
  %v1004 = vld [vmem:[%s1001 + $0x8] sm:$0xf]
  %v1005 = vld [vmem:[%s1001 + $0xc] sm:$0xf]
  %s1006 = scalar_lea.vmem %s3, 160
  %v1007 = vld [vmem:[%s1006] sm:$0xf]
  %v1008 = vld [vmem:[%s1006 + $0x4] sm:$0xf]
  %v1009 = vld [vmem:[%s1006 + $0x8] sm:$0xf]
  %v1010 = vld [vmem:[%s1006 + $0xc] sm:$0xf]
  %s1011 = scalar_lea.vmem %s3, 176
  %v1012 = vld [vmem:[%s1011] sm:$0xf]
  %v1013 = vld [vmem:[%s1011 + $0x4] sm:$0xf]
  %v1014 = vld [vmem:[%s1011 + $0x8] sm:$0xf]
  %v1015 = vld [vmem:[%s1011 + $0xc] sm:$0xf]
  %v1016 = vsel %vm75, %v984, 0.0
  %1017 = vadd.xlane.f32.xlu0 %v1016
  %v1018 = vpop.xlane.xlu0 %1017
  %v1019 = vsel %vm75, %v985, 0.0
  %1020 = vadd.xlane.f32.xlu0 %v1019
  %v1021 = vpop.xlane.xlu0 %1020
  %v1022 = vmul.f32 %v1018, %v82
  %v1023 = vmul.f32 %v1021, %v82
  %v1024 = vsub.f32 %v984, %v1022
  %v1025 = vsub.f32 %v985, %v1023
  %v1026 = vmul.f32 %v1024, %v1024
  %v1027 = vmul.f32 %v1025, %v1025
  %v1028 = vsel %vm75, %v1026, 0.0
  %1029 = vadd.xlane.f32.xlu0 %v1028
  %v1030 = vpop.xlane.xlu0 %1029
  %v1031 = vsel %vm75, %v1027, 0.0
  %1032 = vadd.xlane.f32.xlu0 %v1031
  %v1033 = vpop.xlane.xlu0 %1032
  %v1034 = vmul.f32 %v1030, %v82
  %v1035 = vmul.f32 %v1033, %v82
  %v1036 = vadd.f32 %v1034, 1e-08
  %v1037 = vadd.f32 %v1035, 1e-08
  %v1038 = vrsqrt.pop %v1036
  %v1039 = vrsqrt.pop %v1037
  %v1040 = vmul.f32 %v1024, %v1038
  %v1041 = vmul.f32 %v1025, %v1039
  %v1042 = vlaneseq
  %v1043 = vshrl.u32 %v1042, 7
  %v1044 = vsub.s32 2, %v1043
  %v1045 = vrot.slane %v32, %v1044
  %v1046 = vmul.f32 %v1040, %v1045
  %v1047 = vmul.f32 %v1041, %v1045
  %v1048 = vlaneseq
  %v1049 = vshrl.u32 %v1048, 7
  %v1050 = vsub.s32 3, %v1049
  %v1051 = vrot.slane %v32, %v1050
  %v1052 = vadd.f32 %v1046, %v1051
  %v1053 = vadd.f32 %v1047, %v1051
  %v1054 = vpack.c.bf16 %v1053, %v1052
  %v1055 = vlaneseq
  %v1056 = vshrl.u32 %v1055, 7
  %v1057 = vsub.s32 4, %v1056
  %v1058 = vrot.slane %v32, %v1057
  %v1063 = vunpack.c.l.b16 %v987
  %v1064 = vunpack.c.l.b16 %v988
  %v1065 = vunpack.c.l.b16 %v989
  %v1066 = vunpack.c.l.b16 %v990
  %v1067 = vpack.c.b16 %v1064, %v1063
  %v1068 = vpack.c.b16 %v1066, %v1065
  %v1072 = vsel %vm75, %v1054, 0
  %1074 = vmatprep.subr.bf16.mxu0 0
  %1075 = vmatpush1.bf16.msra.mxu0 %v1067
  %1076 = vmatprep.subr.bf16.mxu0 0
  %1077 = vmatpush1.bf16.msra.mxu0 %v1068
  %1078 = vmatprep.subr.bf16.mxu0 0
  %1079 = vmatpush1.bf16.msra.mxu0 0
  %1080 = vmatprep.subr.bf16.mxu0 0
  %1081 = vmatpush1.bf16.msra.mxu0 0
  %1082 = vmatprep.subr.bf16.mxu0 0
  %1083 = vmatpush1.bf16.msra.mxu0 0
  %1084 = vmatprep.subr.bf16.mxu0 0
  %1085 = vmatpush1.bf16.msra.mxu0 0
  %1086 = vmatprep.subr.bf16.mxu0 0
  %1087 = vmatpush1.bf16.msra.mxu0 0
  %1088 = vmatprep.subr.bf16.mxu0 0
  %1089 = vmatpush1.bf16.msra.mxu0 0
  %1090 = vmatprep.subr.bf16.mxu0 0
  %1091 = vmatpush1.bf16.msra.mxu0 0
  %1092 = vmatprep.subr.bf16.mxu0 0
  %1093 = vmatpush1.bf16.msra.mxu0 0
  %1094 = vmatprep.subr.bf16.mxu0 0
  %1095 = vmatpush1.bf16.msra.mxu0 0
  %1096 = vmatprep.subr.bf16.mxu0 0
  %1097 = vmatpush1.bf16.msra.mxu0 0
  %1098 = vmatprep.subr.bf16.mxu0 0
  %1099 = vmatpush1.bf16.msra.mxu0 0
  %1100 = vmatprep.subr.bf16.mxu0 0
  %1101 = vmatpush1.bf16.msra.mxu0 0
  %1102 = vmatprep.subr.bf16.mxu0 0
  %1103 = vmatpush1.bf16.msra.mxu0 0
  %1104 = vmatprep.subr.bf16.mxu0 0
  %1105 = vmatpush1.bf16.msra.mxu0 0
  %1106 = vmatprep.mubr.bf16.mxu0 0
  %1107 = vmatmul.mubr.bf16.gmra.mrb[0].mxu0 %v1072
  %v1108 = vpop.f32.mrb[0].mxu0
  %v1109 = vadd.f32 %v1058, %v1108
  %v1110 = vpop.f32.mrb[0].mxu0
  %v1111 = vpop.f32.mrb[0].mxu0
  %v1112 = vadd.f32 %v1058, %v1111
  %v1113 = vpop.f32.mrb[0].mxu0
  %1114 = vdwg.mxu0
  %v1115 = vpack.c.bf16 %v985, %v984
  %v1116 = vlaneseq
  %v1117 = vshrl.u32 %v1116, 7
  %v1118 = vsub.s32 5, %v1117
  %v1119 = vrot.slane %v32, %v1118
  %v1124 = vunpack.c.l.b16 %v992
  %v1125 = vunpack.c.l.b16 %v993
  %v1126 = vunpack.c.l.b16 %v994
  %v1127 = vunpack.c.l.b16 %v995
  %v1128 = vpack.c.b16 %v1125, %v1124
  %v1129 = vpack.c.b16 %v1127, %v1126
  %v1133 = vsel %vm75, %v1115, 0
  %1135 = vmatprep.subr.bf16.mxu0 0
  %1136 = vmatpush1.bf16.msra.mxu0 %v1128
  %1137 = vmatprep.subr.bf16.mxu0 0
  %1138 = vmatpush1.bf16.msra.mxu0 %v1129
  %1139 = vmatprep.subr.bf16.mxu0 0
  %1140 = vmatpush1.bf16.msra.mxu0 0
  %1141 = vmatprep.subr.bf16.mxu0 0
  %1142 = vmatpush1.bf16.msra.mxu0 0
  %1143 = vmatprep.subr.bf16.mxu0 0
  %1144 = vmatpush1.bf16.msra.mxu0 0
  %1145 = vmatprep.subr.bf16.mxu0 0
  %1146 = vmatpush1.bf16.msra.mxu0 0
  %1147 = vmatprep.subr.bf16.mxu0 0
  %1148 = vmatpush1.bf16.msra.mxu0 0
  %1149 = vmatprep.subr.bf16.mxu0 0
  %1150 = vmatpush1.bf16.msra.mxu0 0
  %1151 = vmatprep.subr.bf16.mxu0 0
  %1152 = vmatpush1.bf16.msra.mxu0 0
  %1153 = vmatprep.subr.bf16.mxu0 0
  %1154 = vmatpush1.bf16.msra.mxu0 0
  %1155 = vmatprep.subr.bf16.mxu0 0
  %1156 = vmatpush1.bf16.msra.mxu0 0
  %1157 = vmatprep.subr.bf16.mxu0 0
  %1158 = vmatpush1.bf16.msra.mxu0 0
  %1159 = vmatprep.subr.bf16.mxu0 0
  %1160 = vmatpush1.bf16.msra.mxu0 0
  %1161 = vmatprep.subr.bf16.mxu0 0
  %1162 = vmatpush1.bf16.msra.mxu0 0
  %1163 = vmatprep.subr.bf16.mxu0 0
  %1164 = vmatpush1.bf16.msra.mxu0 0
  %1165 = vmatprep.subr.bf16.mxu0 0
  %1166 = vmatpush1.bf16.msra.mxu0 0
  %1167 = vmatprep.mubr.bf16.mxu0 0
  %1168 = vmatmul.mubr.bf16.gmra.mrb[0].mxu0 %v1133
  %v1169 = vpop.f32.mrb[0].mxu0
  %v1170 = vadd.f32 %v1119, %v1169
  %v1171 = vpop.f32.mrb[0].mxu0
  %v1172 = vpop.f32.mrb[0].mxu0
  %v1173 = vadd.f32 %v1119, %v1172
  %v1174 = vpop.f32.mrb[0].mxu0
  %1175 = vdwg.mxu0
  %v1176 = vlaneseq
  %v1177 = vshrl.u32 %v1176, 7
  %v1178 = vsub.s32 6, %v1177
  %v1179 = vrot.slane %v32, %v1178
  %v1184 = vunpack.c.l.b16 %v997
  %v1185 = vunpack.c.l.b16 %v998
  %v1186 = vunpack.c.l.b16 %v999
  %v1187 = vunpack.c.l.b16 %v1000
  %v1188 = vpack.c.b16 %v1185, %v1184
  %v1189 = vpack.c.b16 %v1187, %v1186
  %1192 = vmatprep.subr.bf16.mxu0 0
  %1193 = vmatpush1.bf16.msra.mxu0 %v1188
  %1194 = vmatprep.subr.bf16.mxu0 0
  %1195 = vmatpush1.bf16.msra.mxu0 %v1189
  %1196 = vmatprep.subr.bf16.mxu0 0
  %1197 = vmatpush1.bf16.msra.mxu0 0
  %1198 = vmatprep.subr.bf16.mxu0 0
  %1199 = vmatpush1.bf16.msra.mxu0 0
  %1200 = vmatprep.subr.bf16.mxu0 0
  %1201 = vmatpush1.bf16.msra.mxu0 0
  %1202 = vmatprep.subr.bf16.mxu0 0
  %1203 = vmatpush1.bf16.msra.mxu0 0
  %1204 = vmatprep.subr.bf16.mxu0 0
  %1205 = vmatpush1.bf16.msra.mxu0 0
  %1206 = vmatprep.subr.bf16.mxu0 0
  %1207 = vmatpush1.bf16.msra.mxu0 0
  %1208 = vmatprep.subr.bf16.mxu0 0
  %1209 = vmatpush1.bf16.msra.mxu0 0
  %1210 = vmatprep.subr.bf16.mxu0 0
  %1211 = vmatpush1.bf16.msra.mxu0 0
  %1212 = vmatprep.subr.bf16.mxu0 0
  %1213 = vmatpush1.bf16.msra.mxu0 0
  %1214 = vmatprep.subr.bf16.mxu0 0
  %1215 = vmatpush1.bf16.msra.mxu0 0
  %1216 = vmatprep.subr.bf16.mxu0 0
  %1217 = vmatpush1.bf16.msra.mxu0 0
  %1218 = vmatprep.subr.bf16.mxu0 0
  %1219 = vmatpush1.bf16.msra.mxu0 0
  %1220 = vmatprep.subr.bf16.mxu0 0
  %1221 = vmatpush1.bf16.msra.mxu0 0
  %1222 = vmatprep.subr.bf16.mxu0 0
  %1223 = vmatpush1.bf16.msra.mxu0 0
  %1224 = vmatprep.mubr.bf16.mxu0 0
  %1225 = vmatmul.mubr.bf16.gmra.mrb[0].mxu0 %v1133
  %v1226 = vpop.f32.mrb[0].mxu0
  %v1227 = vadd.f32 %v1179, %v1226
  %v1228 = vpop.f32.mrb[0].mxu0
  %v1229 = vpop.f32.mrb[0].mxu0
  %v1230 = vadd.f32 %v1179, %v1229
  %v1231 = vpop.f32.mrb[0].mxu0
  %1232 = vdwg.mxu0
  %v1233 = vpack.c.bf16 %v1109, %v1109
  %v1234 = vpack.c.bf16 %v1112, %v1112
  %v1235 = vpack.c.bf16 %v1170, %v1170
  %v1236 = vpack.c.bf16 %v1173, %v1173
  %v1237 = vpack.c.bf16 %v1227, %v1227
  %v1238 = vpack.c.bf16 %v1230, %v1230
  %v1240 = vsel %vm300, %v1233, 0
  %v1243 = vsel %vm300, %v1235, 0
  %1245 = vmatprep.subr.bf16.mxu0 0
  %1246 = vmatpush1.bf16.xpose.msra.mxu0 %v1243
  %1247 = vmatprep.subr.bf16.mxu0 0
  %1248 = vmatpush1.bf16.xpose.msra.mxu0 0
  %1249 = vmatprep.subr.bf16.mxu0 0
  %1250 = vmatpush1.bf16.xpose.msra.mxu0 0
  %1251 = vmatprep.subr.bf16.mxu0 0
  %1252 = vmatpush1.bf16.xpose.msra.mxu0 0
  %1253 = vmatprep.subr.bf16.mxu0 0
  %1254 = vmatpush1.bf16.xpose.msra.mxu0 0
  %1255 = vmatprep.subr.bf16.mxu0 0
  %1256 = vmatpush1.bf16.xpose.msra.mxu0 0
  %1257 = vmatprep.subr.bf16.mxu0 0
  %1258 = vmatpush1.bf16.xpose.msra.mxu0 0
  %1259 = vmatprep.subr.bf16.mxu0 0
  %1260 = vmatpush1.bf16.xpose.msra.mxu0 0
  %1261 = vmatprep.subr.bf16.mxu0 0
  %1262 = vmatpush1.bf16.xpose.msra.mxu0 0
  %1263 = vmatprep.subr.bf16.mxu0 0
  %1264 = vmatpush1.bf16.xpose.msra.mxu0 0
  %1265 = vmatprep.subr.bf16.mxu0 0
  %1266 = vmatpush1.bf16.xpose.msra.mxu0 0
  %1267 = vmatprep.subr.bf16.mxu0 0
  %1268 = vmatpush1.bf16.xpose.msra.mxu0 0
  %1269 = vmatprep.subr.bf16.mxu0 0
  %1270 = vmatpush1.bf16.xpose.msra.mxu0 0
  %1271 = vmatprep.subr.bf16.mxu0 0
  %1272 = vmatpush1.bf16.xpose.msra.mxu0 0
  %1273 = vmatprep.subr.bf16.mxu0 0
  %1274 = vmatpush1.bf16.xpose.msra.mxu0 0
  %1275 = vmatprep.subr.bf16.mxu0 0
  %1276 = vmatpush1.bf16.xpose.msra.mxu0 0
  %1277 = vmatprep.mubr.bf16.mxu0 0
  %1278 = vmatmul.mubr.bf16.gmra.mrb[0].mxu0 %v1240
  %v1279 = vpop.f32.mrb[0].mxu0
  %v1280 = vadd.f32 0.0, %v1279
  %v1281 = vpop.f32.mrb[0].mxu0
  %v1282 = vpop.f32.mrb[0].mxu0
  %v1283 = vpop.f32.mrb[0].mxu0
  %1284 = vdwg.mxu0
  %v1286 = vsel %vm300, %v1234, 0
  %v1289 = vsel %vm300, %v1236, 0
  %1291 = vmatprep.subr.bf16.mxu0 0
  %1292 = vmatpush1.bf16.xpose.msra.mxu0 %v1289
  %1293 = vmatprep.subr.bf16.mxu0 0
  %1294 = vmatpush1.bf16.xpose.msra.mxu0 0
  %1295 = vmatprep.subr.bf16.mxu0 0
  %1296 = vmatpush1.bf16.xpose.msra.mxu0 0
  %1297 = vmatprep.subr.bf16.mxu0 0
  %1298 = vmatpush1.bf16.xpose.msra.mxu0 0
  %1299 = vmatprep.subr.bf16.mxu0 0
  %1300 = vmatpush1.bf16.xpose.msra.mxu0 0
  %1301 = vmatprep.subr.bf16.mxu0 0
  %1302 = vmatpush1.bf16.xpose.msra.mxu0 0
  %1303 = vmatprep.subr.bf16.mxu0 0
  %1304 = vmatpush1.bf16.xpose.msra.mxu0 0
  %1305 = vmatprep.subr.bf16.mxu0 0
  %1306 = vmatpush1.bf16.xpose.msra.mxu0 0
  %1307 = vmatprep.subr.bf16.mxu0 0
  %1308 = vmatpush1.bf16.xpose.msra.mxu0 0
  %1309 = vmatprep.subr.bf16.mxu0 0
  %1310 = vmatpush1.bf16.xpose.msra.mxu0 0
  %1311 = vmatprep.subr.bf16.mxu0 0
  %1312 = vmatpush1.bf16.xpose.msra.mxu0 0
  %1313 = vmatprep.subr.bf16.mxu0 0
  %1314 = vmatpush1.bf16.xpose.msra.mxu0 0
  %1315 = vmatprep.subr.bf16.mxu0 0
  %1316 = vmatpush1.bf16.xpose.msra.mxu0 0
  %1317 = vmatprep.subr.bf16.mxu0 0
  %1318 = vmatpush1.bf16.xpose.msra.mxu0 0
  %1319 = vmatprep.subr.bf16.mxu0 0
  %1320 = vmatpush1.bf16.xpose.msra.mxu0 0
  %1321 = vmatprep.subr.bf16.mxu0 0
  %1322 = vmatpush1.bf16.xpose.msra.mxu0 0
  %1323 = vmatprep.mubr.bf16.mxu0 0
  %1324 = vmatmul.mubr.bf16.gmra.mrb[0].mxu0 %v1286
  %v1325 = vpop.f32.mrb[0].mxu0
  %v1326 = vadd.f32 0.0, %v1325
  %v1327 = vpop.f32.mrb[0].mxu0
  %v1328 = vpop.f32.mrb[0].mxu0
  %v1329 = vpop.f32.mrb[0].mxu0
  %1330 = vdwg.mxu0
  %v1331 = vmul.f32 %v1280, 0.25
  %v1332 = vmul.f32 %v1326, 0.25
  %v1333 = vadd.f32 %v1331, %v30
  %v1334 = vadd.f32 %v1332, %v30
  %v1335 = vsel %vm397, %v1333, -inf
  %1336 = vmax.xlane.f32.xlu0 %v1335
  %v1337 = vpop.xlane.xlu0 %1336
  %v1338 = vsel %vm397, %v1334, -inf
  %1339 = vmax.xlane.f32.xlu0 %v1338
  %v1340 = vpop.xlane.xlu0 %1339
  %v1341 = vsub.f32 %v1333, %v1337
  %v1342 = vsub.f32 %v1334, %v1340
  %v1343 = vmul.f32 %v1341, 1.442695
  %v1344 = vpow.pop %v1343
  %v1345 = vmul.f32 %v1342, 1.442695
  %v1346 = vpow.pop %v1345
  %v1347 = vsel %vm397, %v1344, 0.0
  %1348 = vadd.xlane.f32.xlu0 %v1347
  %v1349 = vpop.xlane.xlu0 %1348
  %v1350 = vsel %vm397, %v1346, 0.0
  %1351 = vadd.xlane.f32.xlu0 %v1350
  %v1352 = vpop.xlane.xlu0 %1351
  %v1353 = vrcp.pop %v1349
  %v1354 = vmul.f32 %v1344, %v1353
  %v1355 = vrcp.pop %v1352
  %v1356 = vmul.f32 %v1346, %v1355
  %v1357 = vpack.c.bf16 %v1354, %v1354
  %v1358 = vpack.c.bf16 %v1356, %v1356
  %v1360 = vsel %vm397, %v1357, 0
  %v1363 = vsel %vm425, %v1237, 0
  %1365 = vmatprep.subr.bf16.mxu0 0
  %1366 = vmatpush1.bf16.msra.mxu0 %v1363
  %1367 = vmatprep.subr.bf16.mxu0 0
  %1368 = vmatpush1.bf16.msra.mxu0 0
  %1369 = vmatprep.subr.bf16.mxu0 0
  %1370 = vmatpush1.bf16.msra.mxu0 0
  %1371 = vmatprep.subr.bf16.mxu0 0
  %1372 = vmatpush1.bf16.msra.mxu0 0
  %1373 = vmatprep.subr.bf16.mxu0 0
  %1374 = vmatpush1.bf16.msra.mxu0 0
  %1375 = vmatprep.subr.bf16.mxu0 0
  %1376 = vmatpush1.bf16.msra.mxu0 0
  %1377 = vmatprep.subr.bf16.mxu0 0
  %1378 = vmatpush1.bf16.msra.mxu0 0
  %1379 = vmatprep.subr.bf16.mxu0 0
  %1380 = vmatpush1.bf16.msra.mxu0 0
  %1381 = vmatprep.subr.bf16.mxu0 0
  %1382 = vmatpush1.bf16.msra.mxu0 0
  %1383 = vmatprep.subr.bf16.mxu0 0
  %1384 = vmatpush1.bf16.msra.mxu0 0
  %1385 = vmatprep.subr.bf16.mxu0 0
  %1386 = vmatpush1.bf16.msra.mxu0 0
  %1387 = vmatprep.subr.bf16.mxu0 0
  %1388 = vmatpush1.bf16.msra.mxu0 0
  %1389 = vmatprep.subr.bf16.mxu0 0
  %1390 = vmatpush1.bf16.msra.mxu0 0
  %1391 = vmatprep.subr.bf16.mxu0 0
  %1392 = vmatpush1.bf16.msra.mxu0 0
  %1393 = vmatprep.subr.bf16.mxu0 0
  %1394 = vmatpush1.bf16.msra.mxu0 0
  %1395 = vmatprep.subr.bf16.mxu0 0
  %1396 = vmatpush1.bf16.msra.mxu0 0
  %1397 = vmatprep.mubr.bf16.mxu0 0
  %1398 = vmatmul.mubr.bf16.gmra.mrb[0].mxu0 %v1360
  %v1399 = vpop.f32.mrb[0].mxu0
  %v1400 = vadd.f32 0.0, %v1399
  %v1401 = vpop.f32.mrb[0].mxu0
  %v1402 = vpop.f32.mrb[0].mxu0
  %v1403 = vpop.f32.mrb[0].mxu0
  %1404 = vdwg.mxu0
  %v1406 = vsel %vm397, %v1358, 0
  %v1409 = vsel %vm425, %v1238, 0
  %1411 = vmatprep.subr.bf16.mxu0 0
  %1412 = vmatpush1.bf16.msra.mxu0 %v1409
  %1413 = vmatprep.subr.bf16.mxu0 0
  %1414 = vmatpush1.bf16.msra.mxu0 0
  %1415 = vmatprep.subr.bf16.mxu0 0
  %1416 = vmatpush1.bf16.msra.mxu0 0
  %1417 = vmatprep.subr.bf16.mxu0 0
  %1418 = vmatpush1.bf16.msra.mxu0 0
  %1419 = vmatprep.subr.bf16.mxu0 0
  %1420 = vmatpush1.bf16.msra.mxu0 0
  %1421 = vmatprep.subr.bf16.mxu0 0
  %1422 = vmatpush1.bf16.msra.mxu0 0
  %1423 = vmatprep.subr.bf16.mxu0 0
  %1424 = vmatpush1.bf16.msra.mxu0 0
  %1425 = vmatprep.subr.bf16.mxu0 0
  %1426 = vmatpush1.bf16.msra.mxu0 0
  %1427 = vmatprep.subr.bf16.mxu0 0
  %1428 = vmatpush1.bf16.msra.mxu0 0
  %1429 = vmatprep.subr.bf16.mxu0 0
  %1430 = vmatpush1.bf16.msra.mxu0 0
  %1431 = vmatprep.subr.bf16.mxu0 0
  %1432 = vmatpush1.bf16.msra.mxu0 0
  %1433 = vmatprep.subr.bf16.mxu0 0
  %1434 = vmatpush1.bf16.msra.mxu0 0
  %1435 = vmatprep.subr.bf16.mxu0 0
  %1436 = vmatpush1.bf16.msra.mxu0 0
  %1437 = vmatprep.subr.bf16.mxu0 0
  %1438 = vmatpush1.bf16.msra.mxu0 0
  %1439 = vmatprep.subr.bf16.mxu0 0
  %1440 = vmatpush1.bf16.msra.mxu0 0
  %1441 = vmatprep.subr.bf16.mxu0 0
  %1442 = vmatpush1.bf16.msra.mxu0 0
  %1443 = vmatprep.mubr.bf16.mxu0 0
  %1444 = vmatmul.mubr.bf16.gmra.mrb[0].mxu0 %v1406
  %v1445 = vpop.f32.mrb[0].mxu0
  %v1446 = vadd.f32 0.0, %v1445
  %v1447 = vpop.f32.mrb[0].mxu0
  %v1448 = vpop.f32.mrb[0].mxu0
  %v1449 = vpop.f32.mrb[0].mxu0
  %1450 = vdwg.mxu0
  %1452 = vrot.lane.b32.xlu0 %v1233, 112
  %v1453 = vpop.permute.xlu0 %1452
  %1455 = vrot.lane.b32.xlu0 %v1235, 112
  %v1456 = vpop.permute.xlu0 %1455
  %v1458 = vsel %vm300, %v1453, 0
  %v1461 = vsel %vm300, %v1456, 0
  %1463 = vmatprep.subr.bf16.mxu0 0
  %1464 = vmatpush1.bf16.xpose.msra.mxu0 %v1461
  %1465 = vmatprep.subr.bf16.mxu0 0
  %1466 = vmatpush1.bf16.xpose.msra.mxu0 0
  %1467 = vmatprep.subr.bf16.mxu0 0
  %1468 = vmatpush1.bf16.xpose.msra.mxu0 0
  %1469 = vmatprep.subr.bf16.mxu0 0
  %1470 = vmatpush1.bf16.xpose.msra.mxu0 0
  %1471 = vmatprep.subr.bf16.mxu0 0
  %1472 = vmatpush1.bf16.xpose.msra.mxu0 0
  %1473 = vmatprep.subr.bf16.mxu0 0
  %1474 = vmatpush1.bf16.xpose.msra.mxu0 0
  %1475 = vmatprep.subr.bf16.mxu0 0
  %1476 = vmatpush1.bf16.xpose.msra.mxu0 0
  %1477 = vmatprep.subr.bf16.mxu0 0
  %1478 = vmatpush1.bf16.xpose.msra.mxu0 0
  %1479 = vmatprep.subr.bf16.mxu0 0
  %1480 = vmatpush1.bf16.xpose.msra.mxu0 0
  %1481 = vmatprep.subr.bf16.mxu0 0
  %1482 = vmatpush1.bf16.xpose.msra.mxu0 0
  %1483 = vmatprep.subr.bf16.mxu0 0
  %1484 = vmatpush1.bf16.xpose.msra.mxu0 0
  %1485 = vmatprep.subr.bf16.mxu0 0
  %1486 = vmatpush1.bf16.xpose.msra.mxu0 0
  %1487 = vmatprep.subr.bf16.mxu0 0
  %1488 = vmatpush1.bf16.xpose.msra.mxu0 0
  %1489 = vmatprep.subr.bf16.mxu0 0
  %1490 = vmatpush1.bf16.xpose.msra.mxu0 0
  %1491 = vmatprep.subr.bf16.mxu0 0
  %1492 = vmatpush1.bf16.xpose.msra.mxu0 0
  %1493 = vmatprep.subr.bf16.mxu0 0
  %1494 = vmatpush1.bf16.xpose.msra.mxu0 0
  %1495 = vmatprep.mubr.bf16.mxu0 0
  %1496 = vmatmul.mubr.bf16.gmra.mrb[0].mxu0 %v1458
  %v1497 = vpop.f32.mrb[0].mxu0
  %v1498 = vadd.f32 0.0, %v1497
  %v1499 = vpop.f32.mrb[0].mxu0
  %v1500 = vpop.f32.mrb[0].mxu0
  %v1501 = vpop.f32.mrb[0].mxu0
  %1502 = vdwg.mxu0
  %1504 = vrot.lane.b32.xlu0 %v1234, 112
  %v1505 = vpop.permute.xlu0 %1504
  %1507 = vrot.lane.b32.xlu0 %v1236, 112
  %v1508 = vpop.permute.xlu0 %1507
  %v1510 = vsel %vm300, %v1505, 0
  %v1513 = vsel %vm300, %v1508, 0
  %1515 = vmatprep.subr.bf16.mxu0 0
  %1516 = vmatpush1.bf16.xpose.msra.mxu0 %v1513
  %1517 = vmatprep.subr.bf16.mxu0 0
  %1518 = vmatpush1.bf16.xpose.msra.mxu0 0
  %1519 = vmatprep.subr.bf16.mxu0 0
  %1520 = vmatpush1.bf16.xpose.msra.mxu0 0
  %1521 = vmatprep.subr.bf16.mxu0 0
  %1522 = vmatpush1.bf16.xpose.msra.mxu0 0
  %1523 = vmatprep.subr.bf16.mxu0 0
  %1524 = vmatpush1.bf16.xpose.msra.mxu0 0
  %1525 = vmatprep.subr.bf16.mxu0 0
  %1526 = vmatpush1.bf16.xpose.msra.mxu0 0
  %1527 = vmatprep.subr.bf16.mxu0 0
  %1528 = vmatpush1.bf16.xpose.msra.mxu0 0
  %1529 = vmatprep.subr.bf16.mxu0 0
  %1530 = vmatpush1.bf16.xpose.msra.mxu0 0
  %1531 = vmatprep.subr.bf16.mxu0 0
  %1532 = vmatpush1.bf16.xpose.msra.mxu0 0
  %1533 = vmatprep.subr.bf16.mxu0 0
  %1534 = vmatpush1.bf16.xpose.msra.mxu0 0
  %1535 = vmatprep.subr.bf16.mxu0 0
  %1536 = vmatpush1.bf16.xpose.msra.mxu0 0
  %1537 = vmatprep.subr.bf16.mxu0 0
  %1538 = vmatpush1.bf16.xpose.msra.mxu0 0
  %1539 = vmatprep.subr.bf16.mxu0 0
  %1540 = vmatpush1.bf16.xpose.msra.mxu0 0
  %1541 = vmatprep.subr.bf16.mxu0 0
  %1542 = vmatpush1.bf16.xpose.msra.mxu0 0
  %1543 = vmatprep.subr.bf16.mxu0 0
  %1544 = vmatpush1.bf16.xpose.msra.mxu0 0
  %1545 = vmatprep.subr.bf16.mxu0 0
  %1546 = vmatpush1.bf16.xpose.msra.mxu0 0
  %1547 = vmatprep.mubr.bf16.mxu0 0
  %1548 = vmatmul.mubr.bf16.gmra.mrb[0].mxu0 %v1510
  %v1549 = vpop.f32.mrb[0].mxu0
  %v1550 = vadd.f32 0.0, %v1549
  %v1551 = vpop.f32.mrb[0].mxu0
  %v1552 = vpop.f32.mrb[0].mxu0
  %v1553 = vpop.f32.mrb[0].mxu0
  %1554 = vdwg.mxu0
  %v1555 = vmul.f32 %v1498, 0.25
  %v1556 = vmul.f32 %v1550, 0.25
  %v1557 = vadd.f32 %v1555, %v30
  %v1558 = vadd.f32 %v1556, %v30
  %v1559 = vsel %vm397, %v1557, -inf
  %1560 = vmax.xlane.f32.xlu0 %v1559
  %v1561 = vpop.xlane.xlu0 %1560
  %v1562 = vsel %vm397, %v1558, -inf
  %1563 = vmax.xlane.f32.xlu0 %v1562
  %v1564 = vpop.xlane.xlu0 %1563
  %v1565 = vsub.f32 %v1557, %v1561
  %v1566 = vsub.f32 %v1558, %v1564
  %v1567 = vmul.f32 %v1565, 1.442695
  %v1568 = vpow.pop %v1567
  %v1569 = vmul.f32 %v1566, 1.442695
  %v1570 = vpow.pop %v1569
  %v1571 = vsel %vm397, %v1568, 0.0
  %1572 = vadd.xlane.f32.xlu0 %v1571
  %v1573 = vpop.xlane.xlu0 %1572
  %v1574 = vsel %vm397, %v1570, 0.0
  %1575 = vadd.xlane.f32.xlu0 %v1574
  %v1576 = vpop.xlane.xlu0 %1575
  %v1577 = vrcp.pop %v1573
  %v1578 = vmul.f32 %v1568, %v1577
  %v1579 = vrcp.pop %v1576
  %v1580 = vmul.f32 %v1570, %v1579
  %v1581 = vpack.c.bf16 %v1578, %v1578
  %v1582 = vpack.c.bf16 %v1580, %v1580
  %1584 = vrot.lane.b32.xlu0 %v1237, 112
  %v1585 = vpop.permute.xlu0 %1584
  %v1587 = vsel %vm397, %v1581, 0
  %v1590 = vsel %vm425, %v1585, 0
  %1592 = vmatprep.subr.bf16.mxu0 0
  %1593 = vmatpush1.bf16.msra.mxu0 %v1590
  %1594 = vmatprep.subr.bf16.mxu0 0
  %1595 = vmatpush1.bf16.msra.mxu0 0
  %1596 = vmatprep.subr.bf16.mxu0 0
  %1597 = vmatpush1.bf16.msra.mxu0 0
  %1598 = vmatprep.subr.bf16.mxu0 0
  %1599 = vmatpush1.bf16.msra.mxu0 0
  %1600 = vmatprep.subr.bf16.mxu0 0
  %1601 = vmatpush1.bf16.msra.mxu0 0
  %1602 = vmatprep.subr.bf16.mxu0 0
  %1603 = vmatpush1.bf16.msra.mxu0 0
  %1604 = vmatprep.subr.bf16.mxu0 0
  %1605 = vmatpush1.bf16.msra.mxu0 0
  %1606 = vmatprep.subr.bf16.mxu0 0
  %1607 = vmatpush1.bf16.msra.mxu0 0
  %1608 = vmatprep.subr.bf16.mxu0 0
  %1609 = vmatpush1.bf16.msra.mxu0 0
  %1610 = vmatprep.subr.bf16.mxu0 0
  %1611 = vmatpush1.bf16.msra.mxu0 0
  %1612 = vmatprep.subr.bf16.mxu0 0
  %1613 = vmatpush1.bf16.msra.mxu0 0
  %1614 = vmatprep.subr.bf16.mxu0 0
  %1615 = vmatpush1.bf16.msra.mxu0 0
  %1616 = vmatprep.subr.bf16.mxu0 0
  %1617 = vmatpush1.bf16.msra.mxu0 0
  %1618 = vmatprep.subr.bf16.mxu0 0
  %1619 = vmatpush1.bf16.msra.mxu0 0
  %1620 = vmatprep.subr.bf16.mxu0 0
  %1621 = vmatpush1.bf16.msra.mxu0 0
  %1622 = vmatprep.subr.bf16.mxu0 0
  %1623 = vmatpush1.bf16.msra.mxu0 0
  %1624 = vmatprep.mubr.bf16.mxu0 0
  %1625 = vmatmul.mubr.bf16.gmra.mrb[0].mxu0 %v1587
  %v1626 = vpop.f32.mrb[0].mxu0
  %v1627 = vadd.f32 0.0, %v1626
  %v1628 = vpop.f32.mrb[0].mxu0
  %v1629 = vpop.f32.mrb[0].mxu0
  %v1630 = vpop.f32.mrb[0].mxu0
  %1631 = vdwg.mxu0
  %1633 = vrot.lane.b32.xlu0 %v1238, 112
  %v1634 = vpop.permute.xlu0 %1633
  %v1636 = vsel %vm397, %v1582, 0
  %v1639 = vsel %vm425, %v1634, 0
  %1641 = vmatprep.subr.bf16.mxu0 0
  %1642 = vmatpush1.bf16.msra.mxu0 %v1639
  %1643 = vmatprep.subr.bf16.mxu0 0
  %1644 = vmatpush1.bf16.msra.mxu0 0
  %1645 = vmatprep.subr.bf16.mxu0 0
  %1646 = vmatpush1.bf16.msra.mxu0 0
  %1647 = vmatprep.subr.bf16.mxu0 0
  %1648 = vmatpush1.bf16.msra.mxu0 0
  %1649 = vmatprep.subr.bf16.mxu0 0
  %1650 = vmatpush1.bf16.msra.mxu0 0
  %1651 = vmatprep.subr.bf16.mxu0 0
  %1652 = vmatpush1.bf16.msra.mxu0 0
  %1653 = vmatprep.subr.bf16.mxu0 0
  %1654 = vmatpush1.bf16.msra.mxu0 0
  %1655 = vmatprep.subr.bf16.mxu0 0
  %1656 = vmatpush1.bf16.msra.mxu0 0
  %1657 = vmatprep.subr.bf16.mxu0 0
  %1658 = vmatpush1.bf16.msra.mxu0 0
  %1659 = vmatprep.subr.bf16.mxu0 0
  %1660 = vmatpush1.bf16.msra.mxu0 0
  %1661 = vmatprep.subr.bf16.mxu0 0
  %1662 = vmatpush1.bf16.msra.mxu0 0
  %1663 = vmatprep.subr.bf16.mxu0 0
  %1664 = vmatpush1.bf16.msra.mxu0 0
  %1665 = vmatprep.subr.bf16.mxu0 0
  %1666 = vmatpush1.bf16.msra.mxu0 0
  %1667 = vmatprep.subr.bf16.mxu0 0
  %1668 = vmatpush1.bf16.msra.mxu0 0
  %1669 = vmatprep.subr.bf16.mxu0 0
  %1670 = vmatpush1.bf16.msra.mxu0 0
  %1671 = vmatprep.subr.bf16.mxu0 0
  %1672 = vmatpush1.bf16.msra.mxu0 0
  %1673 = vmatprep.mubr.bf16.mxu0 0
  %1674 = vmatmul.mubr.bf16.gmra.mrb[0].mxu0 %v1636
  %v1675 = vpop.f32.mrb[0].mxu0
  %v1676 = vadd.f32 0.0, %v1675
  %v1677 = vpop.f32.mrb[0].mxu0
  %v1678 = vpop.f32.mrb[0].mxu0
  %v1679 = vpop.f32.mrb[0].mxu0
  %1680 = vdwg.mxu0
  %1683 = vrot.lane.b32.xlu0 %v1627, 16
  %v1684 = vpop.permute.xlu0 %1683
  %1685 = vrot.lane.b32.xlu0 %v1676, 16
  %v1686 = vpop.permute.xlu0 %1685
  %v1689 = vsel %vm300, %v1400, %v1684
  %v1690 = vsel %vm300, %v1446, %v1686
  %v1691 = vpack.c.bf16 %v1690, %v1689
  %v1692 = vlaneseq
  %v1693 = vshrl.u32 %v1692, 7
  %v1694 = vsub.s32 7, %v1693
  %v1695 = vrot.slane %v32, %v1694
  %v1700 = vunpack.c.l.b16 %v1002
  %v1701 = vunpack.c.l.b16 %v1003
  %v1702 = vunpack.c.l.b16 %v1004
  %v1703 = vunpack.c.l.b16 %v1005
  %v1704 = vpack.c.b16 %v1701, %v1700
  %v1705 = vpack.c.b16 %v1703, %v1702
  %v1709 = vsel %vm75, %v1691, 0
  %1711 = vmatprep.subr.bf16.mxu0 0
  %1712 = vmatpush1.bf16.msra.mxu0 %v1704
  %1713 = vmatprep.subr.bf16.mxu0 0
  %1714 = vmatpush1.bf16.msra.mxu0 %v1705
  %1715 = vmatprep.subr.bf16.mxu0 0
  %1716 = vmatpush1.bf16.msra.mxu0 0
  %1717 = vmatprep.subr.bf16.mxu0 0
  %1718 = vmatpush1.bf16.msra.mxu0 0
  %1719 = vmatprep.subr.bf16.mxu0 0
  %1720 = vmatpush1.bf16.msra.mxu0 0
  %1721 = vmatprep.subr.bf16.mxu0 0
  %1722 = vmatpush1.bf16.msra.mxu0 0
  %1723 = vmatprep.subr.bf16.mxu0 0
  %1724 = vmatpush1.bf16.msra.mxu0 0
  %1725 = vmatprep.subr.bf16.mxu0 0
  %1726 = vmatpush1.bf16.msra.mxu0 0
  %1727 = vmatprep.subr.bf16.mxu0 0
  %1728 = vmatpush1.bf16.msra.mxu0 0
  %1729 = vmatprep.subr.bf16.mxu0 0
  %1730 = vmatpush1.bf16.msra.mxu0 0
  %1731 = vmatprep.subr.bf16.mxu0 0
  %1732 = vmatpush1.bf16.msra.mxu0 0
  %1733 = vmatprep.subr.bf16.mxu0 0
  %1734 = vmatpush1.bf16.msra.mxu0 0
  %1735 = vmatprep.subr.bf16.mxu0 0
  %1736 = vmatpush1.bf16.msra.mxu0 0
  %1737 = vmatprep.subr.bf16.mxu0 0
  %1738 = vmatpush1.bf16.msra.mxu0 0
  %1739 = vmatprep.subr.bf16.mxu0 0
  %1740 = vmatpush1.bf16.msra.mxu0 0
  %1741 = vmatprep.subr.bf16.mxu0 0
  %1742 = vmatpush1.bf16.msra.mxu0 0
  %1743 = vmatprep.mubr.bf16.mxu0 0
  %1744 = vmatmul.mubr.bf16.gmra.mrb[0].mxu0 %v1709
  %v1745 = vpop.f32.mrb[0].mxu0
  %v1746 = vadd.f32 %v1695, %v1745
  %v1747 = vpop.f32.mrb[0].mxu0
  %v1748 = vpop.f32.mrb[0].mxu0
  %v1749 = vadd.f32 %v1695, %v1748
  %v1750 = vpop.f32.mrb[0].mxu0
  %1751 = vdwg.mxu0
  %v1752 = vadd.f32 %v1052, %v1746
  %v1753 = vadd.f32 %v1053, %v1749
  %v1754 = vsel %vm75, %v1752, 0.0
  %1755 = vadd.xlane.f32.xlu0 %v1754
  %v1756 = vpop.xlane.xlu0 %1755
  %v1757 = vsel %vm75, %v1753, 0.0
  %1758 = vadd.xlane.f32.xlu0 %v1757
  %v1759 = vpop.xlane.xlu0 %1758
  %v1760 = vmul.f32 %v1756, %v82
  %v1761 = vmul.f32 %v1759, %v82
  %v1762 = vsub.f32 %v1752, %v1760
  %v1763 = vsub.f32 %v1753, %v1761
  %v1764 = vmul.f32 %v1762, %v1762
  %v1765 = vmul.f32 %v1763, %v1763
  %v1766 = vsel %vm75, %v1764, 0.0
  %1767 = vadd.xlane.f32.xlu0 %v1766
  %v1768 = vpop.xlane.xlu0 %1767
  %v1769 = vsel %vm75, %v1765, 0.0
  %1770 = vadd.xlane.f32.xlu0 %v1769
  %v1771 = vpop.xlane.xlu0 %1770
  %v1772 = vmul.f32 %v1768, %v82
  %v1773 = vmul.f32 %v1771, %v82
  %v1774 = vadd.f32 %v1772, 1e-08
  %v1775 = vadd.f32 %v1773, 1e-08
  %v1776 = vrsqrt.pop %v1774
  %v1777 = vrsqrt.pop %v1775
  %v1778 = vmul.f32 %v1762, %v1776
  %v1779 = vmul.f32 %v1763, %v1777
  %v1780 = vlaneseq
  %v1781 = vshrl.u32 %v1780, 7
  %v1782 = vsub.s32 0, %v1781
  %v1783 = vrot.slane %v33, %v1782
  %v1784 = vmul.f32 %v1778, %v1783
  %v1785 = vmul.f32 %v1779, %v1783
  %v1786 = vlaneseq
  %v1787 = vshrl.u32 %v1786, 7
  %v1788 = vsub.s32 1, %v1787
  %v1789 = vrot.slane %v33, %v1788
  %v1790 = vadd.f32 %v1784, %v1789
  %v1791 = vadd.f32 %v1785, %v1789
  %v1792 = vpack.c.bf16 %v1791, %v1790
  %v1793 = vlaneseq
  %v1794 = vshrl.u32 %v1793, 7
  %v1795 = vsub.s32 2, %v1794
  %v1796 = vrot.slane %v33, %v1795
  %v1801 = vunpack.c.l.b16 %v1007
  %v1802 = vunpack.c.l.b16 %v1008
  %v1803 = vunpack.c.l.b16 %v1009
  %v1804 = vunpack.c.l.b16 %v1010
  %v1805 = vpack.c.b16 %v1802, %v1801
  %v1806 = vpack.c.b16 %v1804, %v1803
  %v1810 = vsel %vm75, %v1792, 0
  %1812 = vmatprep.subr.bf16.mxu0 0
  %1813 = vmatpush1.bf16.msra.mxu0 %v1805
  %1814 = vmatprep.subr.bf16.mxu0 0
  %1815 = vmatpush1.bf16.msra.mxu0 %v1806
  %1816 = vmatprep.subr.bf16.mxu0 0
  %1817 = vmatpush1.bf16.msra.mxu0 0
  %1818 = vmatprep.subr.bf16.mxu0 0
  %1819 = vmatpush1.bf16.msra.mxu0 0
  %1820 = vmatprep.subr.bf16.mxu0 0
  %1821 = vmatpush1.bf16.msra.mxu0 0
  %1822 = vmatprep.subr.bf16.mxu0 0
  %1823 = vmatpush1.bf16.msra.mxu0 0
  %1824 = vmatprep.subr.bf16.mxu0 0
  %1825 = vmatpush1.bf16.msra.mxu0 0
  %1826 = vmatprep.subr.bf16.mxu0 0
  %1827 = vmatpush1.bf16.msra.mxu0 0
  %1828 = vmatprep.subr.bf16.mxu0 0
  %1829 = vmatpush1.bf16.msra.mxu0 0
  %1830 = vmatprep.subr.bf16.mxu0 0
  %1831 = vmatpush1.bf16.msra.mxu0 0
  %1832 = vmatprep.subr.bf16.mxu0 0
  %1833 = vmatpush1.bf16.msra.mxu0 0
  %1834 = vmatprep.subr.bf16.mxu0 0
  %1835 = vmatpush1.bf16.msra.mxu0 0
  %1836 = vmatprep.subr.bf16.mxu0 0
  %1837 = vmatpush1.bf16.msra.mxu0 0
  %1838 = vmatprep.subr.bf16.mxu0 0
  %1839 = vmatpush1.bf16.msra.mxu0 0
  %1840 = vmatprep.subr.bf16.mxu0 0
  %1841 = vmatpush1.bf16.msra.mxu0 0
  %1842 = vmatprep.subr.bf16.mxu0 0
  %1843 = vmatpush1.bf16.msra.mxu0 0
  %1844 = vmatprep.mubr.bf16.mxu0 0
  %1845 = vmatmul.mubr.bf16.gmra.mrb[0].mxu0 %v1810
  %v1846 = vpop.f32.mrb[0].mxu0
  %v1847 = vadd.f32 %v1796, %v1846
  %v1848 = vpop.f32.mrb[0].mxu0
  %v1849 = vpop.f32.mrb[0].mxu0
  %v1850 = vadd.f32 %v1796, %v1849
  %v1851 = vpop.f32.mrb[0].mxu0
  %1852 = vdwg.mxu0
  %v1853 = vmax.f32 %v1847, 0.0
  %v1854 = vmax.f32 %v1850, 0.0
  %v1855 = vpack.c.bf16 %v1854, %v1853
  %v1860 = vunpack.c.l.b16 %v1012
  %v1861 = vunpack.c.l.b16 %v1013
  %v1862 = vunpack.c.l.b16 %v1014
  %v1863 = vunpack.c.l.b16 %v1015
  %v1864 = vpack.c.b16 %v1861, %v1860
  %v1865 = vpack.c.b16 %v1863, %v1862
  %v1869 = vsel %vm75, %v1855, 0
  %1871 = vmatprep.subr.bf16.mxu0 0
  %1872 = vmatpush1.bf16.msra.mxu0 %v1864
  %1873 = vmatprep.subr.bf16.mxu0 0
  %1874 = vmatpush1.bf16.msra.mxu0 %v1865
  %1875 = vmatprep.subr.bf16.mxu0 0
  %1876 = vmatpush1.bf16.msra.mxu0 0
  %1877 = vmatprep.subr.bf16.mxu0 0
  %1878 = vmatpush1.bf16.msra.mxu0 0
  %1879 = vmatprep.subr.bf16.mxu0 0
  %1880 = vmatpush1.bf16.msra.mxu0 0
  %1881 = vmatprep.subr.bf16.mxu0 0
  %1882 = vmatpush1.bf16.msra.mxu0 0
  %1883 = vmatprep.subr.bf16.mxu0 0
  %1884 = vmatpush1.bf16.msra.mxu0 0
  %1885 = vmatprep.subr.bf16.mxu0 0
  %1886 = vmatpush1.bf16.msra.mxu0 0
  %1887 = vmatprep.subr.bf16.mxu0 0
  %1888 = vmatpush1.bf16.msra.mxu0 0
  %1889 = vmatprep.subr.bf16.mxu0 0
  %1890 = vmatpush1.bf16.msra.mxu0 0
  %1891 = vmatprep.subr.bf16.mxu0 0
  %1892 = vmatpush1.bf16.msra.mxu0 0
  %1893 = vmatprep.subr.bf16.mxu0 0
  %1894 = vmatpush1.bf16.msra.mxu0 0
  %1895 = vmatprep.subr.bf16.mxu0 0
  %1896 = vmatpush1.bf16.msra.mxu0 0
  %1897 = vmatprep.subr.bf16.mxu0 0
  %1898 = vmatpush1.bf16.msra.mxu0 0
  %1899 = vmatprep.subr.bf16.mxu0 0
  %1900 = vmatpush1.bf16.msra.mxu0 0
  %1901 = vmatprep.subr.bf16.mxu0 0
  %1902 = vmatpush1.bf16.msra.mxu0 0
  %1903 = vmatprep.mubr.bf16.mxu0 0
  %1904 = vmatmul.mubr.bf16.gmra.mrb[0].mxu0 %v1869
  %v1905 = vpop.f32.mrb[0].mxu0
  %v1906 = vadd.f32 0.0, %v1905
  %v1907 = vpop.f32.mrb[0].mxu0
  %v1908 = vpop.f32.mrb[0].mxu0
  %v1909 = vadd.f32 0.0, %v1908
  %v1910 = vpop.f32.mrb[0].mxu0
  %1911 = vdwg.mxu0
  %v1912 = vadd.f32 %v1790, %v1906
  %v1913 = vadd.f32 %v1791, %v1909
  %v1914 = vlaneseq
  %v1915 = vshrl.u32 %v1914, 7
  %v1916 = vsub.s32 3, %v1915
  %v1917 = vrot.slane %v33, %v1916
  %v1918 = vadd.f32 %v1912, %v1917
  %v1919 = vadd.f32 %v1913, %v1917
  %v1920 = vmul.f32 %v1918, %v37
  %v1921 = vmul.f32 %v1919, %v42
  %v1922 = vsel %vm75, %v1920, 0.0
  %1923 = vadd.xlane.f32.xlu0 %v1922
  %v1924 = vpop.xlane.xlu0 %1923
  %v1925 = vsel %vm75, %v1921, 0.0
  %1926 = vadd.xlane.f32.xlu0 %v1925
  %v1927 = vpop.xlane.xlu0 %1926
  %v1928 = vmul.f32 %v1924, %v82
  %v1929 = vmul.f32 %v1927, %v82
  %v1930 = vsub.f32 %v1920, %v1928
  %v1931 = vsub.f32 %v1921, %v1929
  %v1932 = vmul.f32 %v1930, %v1930
  %v1933 = vmul.f32 %v1931, %v1931
  %v1934 = vsel %vm75, %v1932, 0.0
  %1935 = vadd.xlane.f32.xlu0 %v1934
  %v1936 = vpop.xlane.xlu0 %1935
  %v1937 = vsel %vm75, %v1933, 0.0
  %1938 = vadd.xlane.f32.xlu0 %v1937
  %v1939 = vpop.xlane.xlu0 %1938
  %v1940 = vmul.f32 %v1936, %v82
  %v1941 = vmul.f32 %v1939, %v82
  %v1942 = vadd.f32 %v1940, 1e-08
  %v1943 = vadd.f32 %v1941, 1e-08
  %v1944 = vrsqrt.pop %v1942
  %v1945 = vrsqrt.pop %v1943
  %v1946 = vmul.f32 %v1930, %v1944
  %v1947 = vmul.f32 %v1931, %v1945
  %v1948 = vlaneseq
  %v1949 = vshrl.u32 %v1948, 7
  %v1950 = vsub.s32 4, %v1949
  %v1951 = vrot.slane %v33, %v1950
  %v1952 = vmul.f32 %v1946, %v1951
  %v1953 = vmul.f32 %v1947, %v1951
  %v1954 = vlaneseq
  %v1955 = vshrl.u32 %v1954, 7
  %v1956 = vsub.s32 5, %v1955
  %v1957 = vrot.slane %v33, %v1956
  %v1958 = vadd.f32 %v1952, %v1957
  %v1959 = vadd.f32 %v1953, %v1957
  %v1960 = vld [vmem:[%s2] sm:$0xff]
  %v1961 = vld [vmem:[%s2 + $0x8] sm:$0xff]
  %v1962 = vld [vmem:[%s2 + $0x10] sm:$0xff]
  %v1963 = vld [vmem:[%s2 + $0x18] sm:$0xff]
  %v1964 = vmul.f32 %v1960, %v1958
  %v1965 = vmul.f32 %v1961, %v1959
  %v1966 = vmul.f32 %v1962, %v1958
  %v1967 = vmul.f32 %v1963, %v1959
  %v1968 = vsel %vm75, %v1964, 0.0
  %1969 = vadd.xlane.f32.xlu0 %v1968
  %v1970 = vpop.xlane.xlu0 %1969
  %v1971 = vsel %vm75, %v1965, 0.0
  %1972 = vadd.xlane.f32.xlu0 %v1971
  %v1973 = vpop.xlane.xlu0 %1972
  %v1974 = vsel %vm75, %v1966, 0.0
  %1975 = vadd.xlane.f32.xlu0 %v1974
  %v1976 = vpop.xlane.xlu0 %1975
  %v1977 = vsel %vm75, %v1967, 0.0
  %1978 = vadd.xlane.f32.xlu0 %v1977
  %v1979 = vpop.xlane.xlu0 %1978
  %v1984 = vlaneseq
  %v1985 = vshrl.u32 %v1984, 7
  %v1986 = vsub.s32 %v28, %v1985
  %v1987 = vrot.slane %v1970, %v1986
  %v1988 = vadd.s32 %v28, 4294967288
  %v1989 = vlaneseq
  %v1990 = vshrl.u32 %v1989, 7
  %v1991 = vsub.s32 %v1988, %v1990
  %v1992 = vrot.slane %v1973, %v1991
  %vm1993 = vcmask 130112
  %v1994 = vsel %vm1993, %v1992, %v1987
  %v1995 = vlaneseq
  %v1996 = vshrl.u32 %v1995, 7
  %v1997 = vsub.s32 %v28, %v1996
  %v1998 = vrot.slane %v1976, %v1997
  %v1999 = vlaneseq
  %v2000 = vshrl.u32 %v1999, 7
  %v2001 = vsub.s32 %v1988, %v2000
  %v2002 = vrot.slane %v1979, %v2001
  %v2003 = vsel %vm1993, %v2002, %v1998
  %vm2004 = vcmask 1041409
  %v2005 = vsel %vm2004, %v2003, %v1994
  %v2007 = vsel %vm300, %v2005, 0.0
  %2008 = vst [vmem:[%s5] sm:$0x3] %v2007
  // Predicated region
  $region22: #{sasrec_forward.1} parent=0 // pred_check
    _
  $region23: #{sasrec_forward.1} parent=0 // pred_check_branch
    %2010 = sbr.rel (0) target = $region25
  $region24: #{sasrec_forward.1} parent=0 // pred_region
    _
  $region25: #{sasrec_forward.1} parent=0 // pred_fallthru
    _
  // Predicated region
  $region26: #{sasrec_forward.1} parent=0 // pred_check
    _
  $region27: #{sasrec_forward.1} parent=0 // pred_check_branch
    %2012 = sbr.rel (0) target = $region29
  $region28: #{sasrec_forward.1} parent=0 // pred_region
    _
  $region29: #{sasrec_forward.1} parent=0 // pred_fallthru
    _

</llo_original>
